<compile_context>
chip_gen: v6e
topology: v6e:2x2x1
jax: 0.10.0
libtpu: 0.0.40
codegen_flags: <defaults>
</compile_context>

<pallas_src>
import jax
import jax.numpy as jnp
from jax.experimental import pallas as pl
from jax.experimental.pallas import tpu as pltpu

FC1_UNITS = 400
FC2_UNITS = 300
LANE = 128


def _round_up(n, m):
    return ((n + m - 1) // m) * m


def _pick_tb(B):
    """Batch tile: sublane-rounded for small B, 256/512 for large training batches."""
    b = _round_up(B, 16)          # 16 = bf16 sublane packing granularity
    if b <= 512:
        return b                  # single batch tile, minimal padding
    return 512 if _round_up(B, 512) == _round_up(B, 256) else 256


# -----------------------------------------------------------------------------
# Kernel: one critic head per grid step.
# Grid = (head, batch_tile); weights/biases carry a squeezed leading head dim.
# -----------------------------------------------------------------------------
def critic_head_kernel(xu_ref,
                       w1_ref, b1_ref, w2_ref, b2_ref, w3_ref, b3_ref,
                       q_ref):
    xu = xu_ref[...]                                                   # (tb, Dp) bf16
    h = jnp.dot(xu, w1_ref[...], preferred_element_type=jnp.float32)  # f32 accumulate
    h = jnp.maximum(h + b1_ref[...], 0.0)
    h = jnp.dot(h.astype(jnp.bfloat16), w2_ref[...],
                preferred_element_type=jnp.float32)
    h = jnp.maximum(h + b2_ref[...], 0.0)
    q = jnp.dot(h.astype(jnp.bfloat16), w3_ref[...],
                preferred_element_type=jnp.float32) + b3_ref[...]
    q_ref[...] = q                                                     # (tb, Ap) f32, lane-dense


# -----------------------------------------------------------------------------
# One-time parameter preprocessing: pad to lane-aligned shapes, cast weights to
# bf16, stack the two heads along a leading axis.
# -----------------------------------------------------------------------------
def prepare_critic_params(params):
    w1, b1, w2, b2, w3, b3, w4, b4, w5, b5, w6, b6 = params
    D = w1.shape[0]
    A = w3.shape[1]
    Dp = _round_up(D, LANE)          # 37  -> 128
    H1 = _round_up(FC1_UNITS, LANE)  # 400 -> 512
    H2 = _round_up(FC2_UNITS, LANE)  # 300 -> 384
    Ap = _round_up(A, LANE)          # 4   -> 128

    def pad_w(w, r, c):
        return jnp.pad(w, ((0, r - w.shape[0]), (0, c - w.shape[1]))).astype(jnp.bfloat16)

    def pad_b(b, c):
        return jnp.pad(b, ((0, 0), (0, c - b.shape[1]))).astype(jnp.float32)

    W1 = jnp.stack([pad_w(w1, Dp, H1), pad_w(w4, Dp, H1)])   # (2, Dp, H1) bf16
    B1 = jnp.stack([pad_b(b1, H1),     pad_b(b4, H1)])       # (2, 1, H1)  f32
    W2 = jnp.stack([pad_w(w2, H1, H2), pad_w(w5, H1, H2)])
    B2 = jnp.stack([pad_b(b2, H2),     pad_b(b5, H2)])
    W3 = jnp.stack([pad_w(w3, H2, Ap), pad_w(w6, H2, Ap)])
    B3 = jnp.stack([pad_b(b3, Ap),     pad_b(b6, Ap)])

    meta = dict(D=int(D), A=int(A), Dp=Dp, H1=H1, H2=H2, Ap=Ap)
    return (W1, B1, W2, B2, W3, B3), meta


def critic_forward(state, action, packed_params, meta, *, tb=None):
    """Returns (q1, q2), each (B, action_dim)."""
    W1, B1, W2, B2, W3, B3 = packed_params
    D, A = meta["D"], meta["A"]
    Dp, H1, H2, Ap = meta["Dp"], meta["H1"], meta["H2"], meta["Ap"]

    B = state.shape[0]
    if tb is None:
        tb = _pick_tb(B)
    Bp = _round_up(B, tb)

    xu = jnp.concatenate([state, action], axis=1)
    xu_p = jnp.pad(xu, ((0, Bp - B), (0, Dp - D))).astype(jnp.bfloat16)

    grid = (2, Bp // tb)   # (head, batch tile) -- head outermost so weights stay resident

    x_spec = pl.BlockSpec((tb, Dp), lambda h, i: (i, 0))
    o_spec = pl.BlockSpec((None, tb, Ap), lambda h, i: (h, i, 0))

    def head_spec(shape):
        # Indexed only by the head coordinate -> DMA'd once per head, resident over batch.
        return pl.BlockSpec((None,) + shape, lambda h, i: (h, 0, 0))

    in_specs = [
        x_spec,
        head_spec((Dp, H1)), head_spec((1, H1)),
        head_spec((H1, H2)), head_spec((1, H2)),
        head_spec((H2, Ap)), head_spec((1, Ap)),
    ]

    layer_elems = Dp * H1 + H1 * H2 + H2 * Ap
    flops = 2 * 2 * Bp * layer_elems                      # 2 heads x 3 matmuls
    bytes_accessed = (2 * 2 * Bp * Dp                     # bf16 xu (read once per head)
                      + 2 * 2 * layer_elems               # bf16 weights, both heads
                      + 4 * 2 * (H1 + H2 + Ap)            # f32 biases
                      + 4 * 2 * Bp * Ap)                  # f32 outputs

    q = pl.pallas_call(
        critic_head_kernel,
        out_shape=jax.ShapeDtypeStruct((2, Bp, Ap), jnp.float32),
        grid=grid,
        in_specs=in_specs,
        out_specs=o_spec,
        compiler_params=pltpu.CompilerParams(
            dimension_semantics=("parallel", "parallel")),
        cost_estimate=pl.CostEstimate(flops=flops, transcendentals=0,
                                      bytes_accessed=bytes_accessed),
    )(xu_p, W1, B1, W2, B2, W3, B3)

    return q[0, :B, :A], q[1, :B, :A]


# -----------------------------------------------------------------------------
# Parameter init (PyTorch nn.Linear default) and f32 reference.
# -----------------------------------------------------------------------------
def init_critic_params(key, state_dim, action_dim):
    def linear(k, fan_in, fan_out):
        kw, kb = jax.random.split(k)
        bound = 1.0 / jnp.sqrt(jnp.float32(fan_in))
        w = jax.random.uniform(kw, (fan_in, fan_out), jnp.float32, -bound, bound)
        b = jax.random.uniform(kb, (1, fan_out), jnp.float32, -bound, bound)
        return w, b

    in_dim = state_dim + action_dim
    k1, k2, k3, k4, k5, k6 = jax.random.split(key, 6)
    w1, b1 = linear(k1, in_dim, FC1_UNITS)
    w2, b2 = linear(k2, FC1_UNITS, FC2_UNITS)
    w3, b3 = linear(k3, FC2_UNITS, action_dim)
    w4, b4 = linear(k4, in_dim, FC1_UNITS)
    w5, b5 = linear(k5, FC1_UNITS, FC2_UNITS)
    w6, b6 = linear(k6, FC2_UNITS, action_dim)
    return (w1, b1, w2, b2, w3, b3, w4, b4, w5, b5, w6, b6)


def critic_reference(state, action, params):
    w1, b1, w2, b2, w3, b3, w4, b4, w5, b5, w6, b6 = params
    xu = jnp.concatenate([state, action], axis=1)
    h = jnp.maximum(xu @ w1 + b1, 0.0)
    h = jnp.maximum(h @ w2 + b2, 0.0)
    q1 = h @ w3 + b3
    g = jnp.maximum(xu @ w4 + b4, 0.0)
    g = jnp.maximum(g @ w5 + b5, 0.0)
    q2 = g @ w6 + b6
    return q1, q2


if __name__ == "__main__":
    state_dim = 33   # Reacher observation size
    action_dim = 4   # Reacher action size

    key = jax.random.PRNGKey(0)
    k_params, k_s, k_a = jax.random.split(key, 3)
    params = init_critic_params(k_params, state_dim, action_dim)
    packed, meta = prepare_critic_params(params)   # one-time pad + bf16 cast + head stack

    # --- small inference batch (grid = (2 heads, 1 batch tile)) ---
    batch = 8
    state = jax.random.normal(k_s, (batch, state_dim), dtype=jnp.float32)
    action = jax.random.uniform(k_a, (batch, action_dim), jnp.float32, -1.0, 1.0)

    q1, q2 = critic_forward(state, action, packed, meta)
    q1 = jax.block_until_ready(q1)
    q2 = jax.block_until_ready(q2)
    r1, r2 = critic_reference(state, action, params)

    assert q1.shape == (batch, action_dim) and q2.shape == (batch, action_dim)
    # bf16 operands with f32 accumulation -> ~1e-2-class tolerance vs f32 reference.
    assert jnp.allclose(q1, r1, atol=2e-2, rtol=2e-2), "q1 mismatch vs JAX reference"
    assert jnp.allclose(q2, r2, atol=2e-2, rtol=2e-2), "q2 mismatch vs JAX reference"

    # --- larger training-style batch exercising the multi-tile batch grid ---
    kb_s, kb_a = jax.random.split(jax.random.PRNGKey(1))
    big = 600
    state_b = jax.random.normal(kb_s, (big, state_dim), dtype=jnp.float32)
    action_b = jax.random.uniform(kb_a, (big, action_dim), jnp.float32, -1.0, 1.0)
    q1b, q2b = critic_forward(state_b, action_b, packed, meta)
    q1b = jax.block_until_ready(q1b)
    q2b = jax.block_until_ready(q2b)
    r1b, r2b = critic_reference(state_b, action_b, params)
    assert q1b.shape == (big, action_dim) and q2b.shape == (big, action_dim)
    assert jnp.allclose(q1b, r1b, atol=2e-2, rtol=2e-2), "q1 mismatch (large batch)"
    assert jnp.allclose(q2b, r2b, atol=2e-2, rtol=2e-2), "q2 mismatch (large batch)"

    print("KERNEL_OK")
</pallas_src>

<mosaic_0001>
module attributes {stable_mosaic.version = 11 : i64} {
  func.func @critic_head_kernel(%arg0: i32, %arg1: i32, %arg2: memref<16x128xbf16, #tpu.memory_space<vmem>>, %arg3: memref<1x128x512xbf16, #tpu.memory_space<vmem>>, %arg4: memref<1x1x512xf32, #tpu.memory_space<vmem>>, %arg5: memref<1x512x384xbf16, #tpu.memory_space<vmem>>, %arg6: memref<1x1x384xf32, #tpu.memory_space<vmem>>, %arg7: memref<1x384x128xbf16, #tpu.memory_space<vmem>>, %arg8: memref<1x1x128xf32, #tpu.memory_space<vmem>>, %arg9: memref<1x16x128xf32, #tpu.memory_space<vmem>>) attributes {dimension_semantics = [#tpu.dimension_semantics<parallel>, #tpu.dimension_semantics<parallel>], iteration_bounds = array<i64: 2, 1>, scalar_prefetch = 0 : i64, scratch_operands = 0 : i64, tpu.core_type = #tpu.core_type<tc>, window_params = [{transform_indices = @transform_0, window_bounds = array<i64: 16, 128>}, {transform_indices = @transform_1, window_bounds = array<i64: 1, 128, 512>}, {transform_indices = @transform_2, window_bounds = array<i64: 1, 1, 512>}, {transform_indices = @transform_3, window_bounds = array<i64: 1, 512, 384>}, {transform_indices = @transform_4, window_bounds = array<i64: 1, 1, 384>}, {transform_indices = @transform_5, window_bounds = array<i64: 1, 384, 128>}, {transform_indices = @transform_6, window_bounds = array<i64: 1, 1, 128>}, {transform_indices = @transform_7, window_bounds = array<i64: 1, 16, 128>}]} {
    %c0 = arith.constant 0 : index
    %c0_0 = arith.constant 0 : index
    %0 = vector.load %arg2[%c0, %c0_0] : memref<16x128xbf16, #tpu.memory_space<vmem>>, vector<16x128xbf16>
    %c0_1 = arith.constant 0 : index
    %c0_2 = arith.constant 0 : index
    %c0_3 = arith.constant 0 : index
    %1 = vector.load %arg3[%c0_1, %c0_2, %c0_3] : memref<1x128x512xbf16, #tpu.memory_space<vmem>>, vector<1x128x512xbf16>
    %2 = vector.shape_cast %1 : vector<1x128x512xbf16> to vector<128x512xbf16>
    %cst = arith.constant dense<0.000000e+00> : vector<16x512xf32>
    %3 = tpu.matmul %0, %2, %cst {dimension_numbers = #tpu.dot_dimension_numbers<[1], [0], [0], [1], [0, 0, 1, 1], [], []>} : vector<16x128xbf16>, vector<128x512xbf16>, vector<16x512xf32> -> vector<16x512xf32>
    %c0_4 = arith.constant 0 : index
    %c0_5 = arith.constant 0 : index
    %c0_6 = arith.constant 0 : index
    %4 = vector.load %arg4[%c0_4, %c0_5, %c0_6] : memref<1x1x512xf32, #tpu.memory_space<vmem>>, vector<1x1x512xf32>
    %5 = vector.shape_cast %4 : vector<1x1x512xf32> to vector<1x512xf32>
    %6 = vector.broadcast %5 : vector<1x512xf32> to vector<16x512xf32>
    %7 = arith.addf %3, %6 : vector<16x512xf32>
    %cst_7 = arith.constant 0.000000e+00 : f32
    %8 = vector.broadcast %cst_7 : f32 to vector<16x512xf32>
    %9 = arith.maximumf %7, %8 : vector<16x512xf32>
    %10 = arith.truncf %9 : vector<16x512xf32> to vector<16x512xbf16>
    %c0_8 = arith.constant 0 : index
    %c0_9 = arith.constant 0 : index
    %c0_10 = arith.constant 0 : index
    %11 = vector.load %arg5[%c0_8, %c0_9, %c0_10] : memref<1x512x384xbf16, #tpu.memory_space<vmem>>, vector<1x512x384xbf16>
    %12 = vector.shape_cast %11 : vector<1x512x384xbf16> to vector<512x384xbf16>
    %cst_11 = arith.constant dense<0.000000e+00> : vector<16x384xf32>
    %13 = tpu.matmul %10, %12, %cst_11 {dimension_numbers = #tpu.dot_dimension_numbers<[1], [0], [0], [1], [0, 0, 1, 1], [], []>} : vector<16x512xbf16>, vector<512x384xbf16>, vector<16x384xf32> -> vector<16x384xf32>
    %c0_12 = arith.constant 0 : index
    %c0_13 = arith.constant 0 : index
    %c0_14 = arith.constant 0 : index
    %14 = vector.load %arg6[%c0_12, %c0_13, %c0_14] : memref<1x1x384xf32, #tpu.memory_space<vmem>>, vector<1x1x384xf32>
    %15 = vector.shape_cast %14 : vector<1x1x384xf32> to vector<1x384xf32>
    %16 = vector.broadcast %15 : vector<1x384xf32> to vector<16x384xf32>
    %17 = arith.addf %13, %16 : vector<16x384xf32>
    %cst_15 = arith.constant 0.000000e+00 : f32
    %18 = vector.broadcast %cst_15 : f32 to vector<16x384xf32>
    %19 = arith.maximumf %17, %18 : vector<16x384xf32>
    %20 = arith.truncf %19 : vector<16x384xf32> to vector<16x384xbf16>
    %c0_16 = arith.constant 0 : index
    %c0_17 = arith.constant 0 : index
    %c0_18 = arith.constant 0 : index
    %21 = vector.load %arg7[%c0_16, %c0_17, %c0_18] : memref<1x384x128xbf16, #tpu.memory_space<vmem>>, vector<1x384x128xbf16>
    %22 = vector.shape_cast %21 : vector<1x384x128xbf16> to vector<384x128xbf16>
    %cst_19 = arith.constant dense<0.000000e+00> : vector<16x128xf32>
    %23 = tpu.matmul %20, %22, %cst_19 {dimension_numbers = #tpu.dot_dimension_numbers<[1], [0], [0], [1], [0, 0, 1, 1], [], []>} : vector<16x384xbf16>, vector<384x128xbf16>, vector<16x128xf32> -> vector<16x128xf32>
    %c0_20 = arith.constant 0 : index
    %c0_21 = arith.constant 0 : index
    %c0_22 = arith.constant 0 : index
    %24 = vector.load %arg8[%c0_20, %c0_21, %c0_22] : memref<1x1x128xf32, #tpu.memory_space<vmem>>, vector<1x1x128xf32>
    %25 = vector.shape_cast %24 : vector<1x1x128xf32> to vector<1x128xf32>
    %26 = vector.broadcast %25 : vector<1x128xf32> to vector<16x128xf32>
    %27 = arith.addf %23, %26 : vector<16x128xf32>
    %c0_23 = arith.constant 0 : index
    %c0_24 = arith.constant 0 : index
    %c0_25 = arith.constant 0 : index
    %28 = vector.load %arg9[%c0_23, %c0_24, %c0_25] : memref<1x16x128xf32, #tpu.memory_space<vmem>>, vector<1x16x128xf32>
    %29 = vector.shape_cast %28 : vector<1x16x128xf32> to vector<16x128xf32>
    %30 = vector.shape_cast %27 : vector<16x128xf32> to vector<1x16x128xf32>
    tpu.vector_store %arg9[%c0_23, %c0_24, %c0_25], %30 {strides = array<i32>} : memref<1x16x128xf32, #tpu.memory_space<vmem>>, vector<1x16x128xf32>,
    return
  }
  func.func @transform_0(%arg0: i32, %arg1: i32) -> (i32, i32) {
    %c0_i32 = arith.constant 0 : i32
    %c0_i32_0 = arith.constant 0 : i32
    return %arg1, %c0_i32 : i32, i32
  }
  func.func @transform_1(%arg0: i32, %arg1: i32) -> (i32, i32, i32) {
    %c0_i32 = arith.constant 0 : i32
    %c0_i32_0 = arith.constant 0 : i32
    %c0_i32_1 = arith.constant 0 : i32
    return %arg0, %c0_i32, %c0_i32_0 : i32, i32, i32
  }
  func.func @transform_2(%arg0: i32, %arg1: i32) -> (i32, i32, i32) {
    %c0_i32 = arith.constant 0 : i32
    %c0_i32_0 = arith.constant 0 : i32
    %c0_i32_1 = arith.constant 0 : i32
    return %arg0, %c0_i32, %c0_i32_0 : i32, i32, i32
  }
  func.func @transform_3(%arg0: i32, %arg1: i32) -> (i32, i32, i32) {
    %c0_i32 = arith.constant 0 : i32
    %c0_i32_0 = arith.constant 0 : i32
    %c0_i32_1 = arith.constant 0 : i32
    return %arg0, %c0_i32, %c0_i32_0 : i32, i32, i32
  }
  func.func @transform_4(%arg0: i32, %arg1: i32) -> (i32, i32, i32) {
    %c0_i32 = arith.constant 0 : i32
    %c0_i32_0 = arith.constant 0 : i32
    %c0_i32_1 = arith.constant 0 : i32
    return %arg0, %c0_i32, %c0_i32_0 : i32, i32, i32
  }
  func.func @transform_5(%arg0: i32, %arg1: i32) -> (i32, i32, i32) {
    %c0_i32 = arith.constant 0 : i32
    %c0_i32_0 = arith.constant 0 : i32
    %c0_i32_1 = arith.constant 0 : i32
    return %arg0, %c0_i32, %c0_i32_0 : i32, i32, i32
  }
  func.func @transform_6(%arg0: i32, %arg1: i32) -> (i32, i32, i32) {
    %c0_i32 = arith.constant 0 : i32
    %c0_i32_0 = arith.constant 0 : i32
    %c0_i32_1 = arith.constant 0 : i32
    return %arg0, %c0_i32, %c0_i32_0 : i32, i32, i32
  }
  func.func @transform_7(%arg0: i32, %arg1: i32) -> (i32, i32, i32) {
    %c0_i32 = arith.constant 0 : i32
    %c0_i32_0 = arith.constant 0 : i32
    return %arg0, %arg1, %c0_i32 : i32, i32, i32
  }
}

</mosaic_0001>

<llo_original>
// kernel: tpu_custom_call.1
$region0: #{tpu_custom_call.1}
  #allocation0 [shape = 'u32[]', space=smem, size = 0x4, offset = 0x4, fixed_abs, tag = 'smem constant byte address 0x4 - core index']
  #allocation1 [shape = 'u32[144,128]{1,0:T(1,128)}', space=vmem, size = 0x12000, scoped, tag = 'internal scratch']
  %s0 = inlined_call_operand.hbm [shape: bf16[16,128], index: 0, kind: input, shape index: {}]
  %s1 = inlined_call_operand.hbm [shape: bf16[2,128,512], index: 1, kind: input, shape index: {}]
  %s2 = inlined_call_operand.hbm [shape: f32[2,1,512], index: 2, kind: input, shape index: {}]
  %s3 = inlined_call_operand.hbm [shape: bf16[2,512,384], index: 3, kind: input, shape index: {}]
  %s4 = inlined_call_operand.vmem [shape: f32[2,1,384], index: 4, kind: input, shape index: {}]
  %s5 = inlined_call_operand.hbm [shape: bf16[2,384,128], index: 5, kind: input, shape index: {}]
  %s6 = inlined_call_operand.vmem [shape: f32[2,1,128], index: 6, kind: input, shape index: {}]
  %s7 = inlined_call_operand.hbm [shape: f32[2,16,128], index: 7, kind: output, shape index: {}]
  %s8 = sld [smem:[#allocation0]]
  $region81: #{tpu_custom_call.1} parent=0
    _
  %s10 = ssub.s32 1, %s8
  %s11 = scalar_select 0, %s10, %s8
  $region1: #{tpu_custom_call.1} parent=0
    #allocation2 [shape = 'u8[4096]{0}', space=vmem, size = 0x1000, scoped, tag = 'input window, operand 0, single buffered']
    #allocation3 [shape = 's32[2]{0}', space=sflag, size = 0x8, scoped, tag = 'scoped memory for tpu_custom_call.1']
    #allocation4 [shape = 's32[2]{0}', space=sflag, size = 0x8, scoped, tag = 'scoped memory for tpu_custom_call.1']
    #allocation5 [shape = 'u8[262144]{0}', space=vmem, size = 0x40000, scoped, tag = 'input window, operand 1']
    #allocation6 [shape = 's32[2]{0}', space=sflag, size = 0x8, scoped, tag = 'scoped memory for tpu_custom_call.1']
    #allocation7 [shape = 'u8[4096]{0}', space=vmem, size = 0x1000, scoped, tag = 'input window, operand 2']
    #allocation8 [shape = 'u8[786432]{0}', space=vmem, size = 0xc0000, scoped, tag = 'input window, operand 3']
    #allocation9 [shape = 's32[2]{0}', space=sflag, size = 0x8, scoped, tag = 'scoped memory for tpu_custom_call.1']
    #allocation10 [shape = 'u8[196608]{0}', space=vmem, size = 0x30000, scoped, tag = 'input window, operand 5']
    #allocation11 [shape = 'u8[16384]{0}', space=vmem, size = 0x4000, scoped, tag = 'output window, operand 0']
    %12 = vsyncpa [#allocation3], 0
    %13 = vsyncpa [#allocation6], 0
    %s14 = scalar_lea.sflag [#allocation6], 1
    %15 = vsyncpa %s14, 0
    %16 = vsyncpa [#allocation9], 0
    %s17 = scalar_lea.sflag [#allocation9], 1
    %18 = vsyncpa %s17, 0
    %19 = vsyncpa [#allocation4], 0
    %s20 = scalar_lea.sflag [#allocation4], 1
    %21 = vsyncpa %s20, 0
    loop: start=0, step=1, limit=4
    $region2: #{tpu_custom_call.1} parent=1 // loop_pre_header
      _
    $region3: #{tpu_custom_call.1} parent=1 // loop_header
      %s23 = sphi 0, %s27
      %p24 = scmp.ge.s32.totalorder %s23, 4
      %s30 = sphi 0, %s42
      %s31 = sphi 0, %s38
      %s32 = sphi 0, %s30
      %s33 = sphi 0, %s31
      %s34 = sphi 0, %s32
      %s35 = sphi 0, %s33
      %s45 = sphi 0, %s47
      %s48 = sphi 0, %s45
      %s49 = sphi 0, %s48
      %s65 = sphi 0, %s49
      %s71 = sphi 0, %s73
      %s74 = sphi 0, %s71
      %s75 = sphi 0, %s74
      %s91 = sphi 0, %s75
      %s97 = sphi 0, %s99
      %s100 = sphi 0, %s97
      %s101 = sphi 0, %s100
      %s117 = sphi 0, %s101
      %s123 = sphi 0, %s125
      %s126 = sphi 0, %s123
      %s127 = sphi 0, %s126
      %s143 = sphi 0, %s127
      %s149 = sphi 0, %s151
      %s152 = sphi 0, %s149
      %s153 = sphi 0, %s152
      %s169 = sphi 0, %s153
      %s175 = sphi 0, %s177
      %s178 = sphi 0, %s175
      %s179 = sphi 0, %s178
      %s195 = sphi 0, %s179
      %s201 = sphi 0, %s203
      %s204 = sphi 0, %s201
      %s205 = sphi 0, %s204
      %s221 = sphi 0, %s205
      %s229 = sphi 0, %s231
      %s232 = sphi 0, %s229
      %s233 = sphi 0, %s232
      %s249 = sphi 0, %s233
    $region4: #{tpu_custom_call.1} parent=1 // loop_header_branch
      %26 = sbr.rel (%p24) target = $region8
    $region5: #{tpu_custom_call.1} parent=1 // loop_body
      %s28 = ssub.s32 %s23, 1
      %s29 = ssub.s32 %s23, 2
      %s36 = sadd.s32 1, %s31
      %p37 = scmp.ge.s32.totalorder %s36, 1
      %s38 = scalar_select %p37, 0, %s36
      %s39 = sadd.s32 1, %s30
      %s40 = scalar_select %p37, %s39, %s30
      %p41 = scmp.ge.s32.totalorder %s40, 2
      %s42 = scalar_select %p41, 0, %s40
      %s43 = ssub.s32 %s31, %s38
      %p44 = scmp.eq.s32.totalorder %s43, 0
      %s46 = sadd.s32 %s45, 1
      %s47 = scalar_select %p44, %s45, %s46
      %p50 = pneg %p44
      %p51 = scmp.eq.s32.totalorder %s23, 1
      %p52 = por %p50, %p51
      %p53 = scmp.ne.s32.totalorder %s45, %s48
      %p54 = scmp.eq.s32.totalorder %s23, 0
      %p55 = por %p53, %p54
      %p56 = scmp.ne.s32.totalorder %s45, %s48
      %p57 = scmp.eq.s32.totalorder %s28, 1
      %p58 = por %p56, %p57
      %p59 = scmp.ne.s32.totalorder %s48, %s49
      %p60 = scmp.eq.s32.totalorder %s28, 0
      %p61 = por %p59, %p60
      %p62 = scmp.ne.s32.totalorder %s48, %s49
      %p63 = scmp.eq.s32.totalorder %s29, 1
      %p64 = por %p62, %p63
      %p66 = scmp.ne.s32.totalorder %s49, %s65
      %p67 = scmp.eq.s32.totalorder %s29, 0
      %p68 = por %p66, %p67
      %s69 = ssub.s32 %s30, %s42
      %p70 = scmp.eq.s32.totalorder %s69, 0
      %s72 = sadd.s32 %s71, 1
      %s73 = scalar_select %p70, %s71, %s72
      %p76 = pneg %p70
      %p77 = scmp.eq.s32.totalorder %s23, 1
      %p78 = por %p76, %p77
      %p79 = scmp.ne.s32.totalorder %s71, %s74
      %p80 = scmp.eq.s32.totalorder %s23, 0
      %p81 = por %p79, %p80
      %p82 = scmp.ne.s32.totalorder %s71, %s74
      %p83 = scmp.eq.s32.totalorder %s28, 1
      %p84 = por %p82, %p83
      %p85 = scmp.ne.s32.totalorder %s74, %s75
      %p86 = scmp.eq.s32.totalorder %s28, 0
      %p87 = por %p85, %p86
      %p88 = scmp.ne.s32.totalorder %s74, %s75
      %p89 = scmp.eq.s32.totalorder %s29, 1
      %p90 = por %p88, %p89
      %p92 = scmp.ne.s32.totalorder %s75, %s91
      %p93 = scmp.eq.s32.totalorder %s29, 0
      %p94 = por %p92, %p93
      %s95 = ssub.s32 %s30, %s42
      %p96 = scmp.eq.s32.totalorder %s95, 0
      %s98 = sadd.s32 %s97, 1
      %s99 = scalar_select %p96, %s97, %s98
      %p102 = pneg %p96
      %p103 = scmp.eq.s32.totalorder %s23, 1
      %p104 = por %p102, %p103
      %p105 = scmp.ne.s32.totalorder %s97, %s100
      %p106 = scmp.eq.s32.totalorder %s23, 0
      %p107 = por %p105, %p106
      %p108 = scmp.ne.s32.totalorder %s97, %s100
      %p109 = scmp.eq.s32.totalorder %s28, 1
      %p110 = por %p108, %p109
      %p111 = scmp.ne.s32.totalorder %s100, %s101
      %p112 = scmp.eq.s32.totalorder %s28, 0
      %p113 = por %p111, %p112
      %p114 = scmp.ne.s32.totalorder %s100, %s101
      %p115 = scmp.eq.s32.totalorder %s29, 1
      %p116 = por %p114, %p115
      %p118 = scmp.ne.s32.totalorder %s101, %s117
      %p119 = scmp.eq.s32.totalorder %s29, 0
      %p120 = por %p118, %p119
      %s121 = ssub.s32 %s30, %s42
      %p122 = scmp.eq.s32.totalorder %s121, 0
      %s124 = sadd.s32 %s123, 1
      %s125 = scalar_select %p122, %s123, %s124
      %p128 = pneg %p122
      %p129 = scmp.eq.s32.totalorder %s23, 1
      %p130 = por %p128, %p129
      %p131 = scmp.ne.s32.totalorder %s123, %s126
      %p132 = scmp.eq.s32.totalorder %s23, 0
      %p133 = por %p131, %p132
      %p134 = scmp.ne.s32.totalorder %s123, %s126
      %p135 = scmp.eq.s32.totalorder %s28, 1
      %p136 = por %p134, %p135
      %p137 = scmp.ne.s32.totalorder %s126, %s127
      %p138 = scmp.eq.s32.totalorder %s28, 0
      %p139 = por %p137, %p138
      %p140 = scmp.ne.s32.totalorder %s126, %s127
      %p141 = scmp.eq.s32.totalorder %s29, 1
      %p142 = por %p140, %p141
      %p144 = scmp.ne.s32.totalorder %s127, %s143
      %p145 = scmp.eq.s32.totalorder %s29, 0
      %p146 = por %p144, %p145
      %s147 = ssub.s32 %s30, %s42
      %p148 = scmp.eq.s32.totalorder %s147, 0
      %s150 = sadd.s32 %s149, 1
      %s151 = scalar_select %p148, %s149, %s150
      %p154 = pneg %p148
      %p155 = scmp.eq.s32.totalorder %s23, 1
      %p156 = por %p154, %p155
      %p157 = scmp.ne.s32.totalorder %s149, %s152
      %p158 = scmp.eq.s32.totalorder %s23, 0
      %p159 = por %p157, %p158
      %p160 = scmp.ne.s32.totalorder %s149, %s152
      %p161 = scmp.eq.s32.totalorder %s28, 1
      %p162 = por %p160, %p161
      %p163 = scmp.ne.s32.totalorder %s152, %s153
      %p164 = scmp.eq.s32.totalorder %s28, 0
      %p165 = por %p163, %p164
      %p166 = scmp.ne.s32.totalorder %s152, %s153
      %p167 = scmp.eq.s32.totalorder %s29, 1
      %p168 = por %p166, %p167
      %p170 = scmp.ne.s32.totalorder %s153, %s169
      %p171 = scmp.eq.s32.totalorder %s29, 0
      %p172 = por %p170, %p171
      %s173 = ssub.s32 %s30, %s42
      %p174 = scmp.eq.s32.totalorder %s173, 0
      %s176 = sadd.s32 %s175, 1
      %s177 = scalar_select %p174, %s175, %s176
      %p180 = pneg %p174
      %p181 = scmp.eq.s32.totalorder %s23, 1
      %p182 = por %p180, %p181
      %p183 = scmp.ne.s32.totalorder %s175, %s178
      %p184 = scmp.eq.s32.totalorder %s23, 0
      %p185 = por %p183, %p184
      %p186 = scmp.ne.s32.totalorder %s175, %s178
      %p187 = scmp.eq.s32.totalorder %s28, 1
      %p188 = por %p186, %p187
      %p189 = scmp.ne.s32.totalorder %s178, %s179
      %p190 = scmp.eq.s32.totalorder %s28, 0
      %p191 = por %p189, %p190
      %p192 = scmp.ne.s32.totalorder %s178, %s179
      %p193 = scmp.eq.s32.totalorder %s29, 1
      %p194 = por %p192, %p193
      %p196 = scmp.ne.s32.totalorder %s179, %s195
      %p197 = scmp.eq.s32.totalorder %s29, 0
      %p198 = por %p196, %p197
      %s199 = ssub.s32 %s30, %s42
      %p200 = scmp.eq.s32.totalorder %s199, 0
      %s202 = sadd.s32 %s201, 1
      %s203 = scalar_select %p200, %s201, %s202
      %p206 = pneg %p200
      %p207 = scmp.eq.s32.totalorder %s23, 1
      %p208 = por %p206, %p207
      %p209 = scmp.ne.s32.totalorder %s201, %s204
      %p210 = scmp.eq.s32.totalorder %s23, 0
      %p211 = por %p209, %p210
      %p212 = scmp.ne.s32.totalorder %s201, %s204
      %p213 = scmp.eq.s32.totalorder %s28, 1
      %p214 = por %p212, %p213
      %p215 = scmp.ne.s32.totalorder %s204, %s205
      %p216 = scmp.eq.s32.totalorder %s28, 0
      %p217 = por %p215, %p216
      %p218 = scmp.ne.s32.totalorder %s204, %s205
      %p219 = scmp.eq.s32.totalorder %s29, 1
      %p220 = por %p218, %p219
      %p222 = scmp.ne.s32.totalorder %s205, %s221
      %p223 = scmp.eq.s32.totalorder %s29, 0
      %p224 = por %p222, %p223
      %s225 = ssub.s32 %s30, %s42
      %s226 = ssub.s32 %s31, %s38
      %s227 = sor.u32 %s225, %s226
      %p228 = scmp.eq.s32.totalorder %s227, 0
      %s230 = sadd.s32 %s229, 1
      %s231 = scalar_select %p228, %s229, %s230
      %p234 = pneg %p228
      %p235 = scmp.eq.s32.totalorder %s23, 1
      %p236 = por %p234, %p235
      %p237 = scmp.ne.s32.totalorder %s229, %s232
      %p238 = scmp.eq.s32.totalorder %s23, 0
      %p239 = por %p237, %p238
      %p240 = scmp.ne.s32.totalorder %s229, %s232
      %p241 = scmp.eq.s32.totalorder %s28, 1
      %p242 = por %p240, %p241
      %p243 = scmp.ne.s32.totalorder %s232, %s233
      %p244 = scmp.eq.s32.totalorder %s28, 0
      %p245 = por %p243, %p244
      %p246 = scmp.ne.s32.totalorder %s232, %s233
      %p247 = scmp.eq.s32.totalorder %s29, 1
      %p248 = por %p246, %p247
      %p250 = scmp.ne.s32.totalorder %s233, %s249
      %p251 = scmp.eq.s32.totalorder %s29, 0
      %p252 = por %p250, %p251
      %p253 = scmp.le.s32.totalorder 1, %s23
      %p254 = scmp.lt.s32.totalorder %s23, 3
      %p255 = pnand %p253, %p254
      %p256 = pneg %p255
      // Predicated region
      $region9: #{tpu_custom_call.1} parent=5 // pred_check
        _
      $region10: #{tpu_custom_call.1} parent=5 // pred_check_branch
        %258 = sbr.rel (%p255) target = $region12
      $region11: #{tpu_custom_call.1} parent=5 // pred_region
        %s259 = ssub.s32 %s23, 1
        // Predicated region
        $region13: #{tpu_custom_call.1} parent=11 // pred_check
          %p260 = pneg %p61
        $region14: #{tpu_custom_call.1} parent=11 // pred_check_branch
          %262 = sbr.rel (%p260) target = $region16
        $region15: #{tpu_custom_call.1} parent=11 // pred_region
          %s263 = smul.u32 2, %s33
          %s265 = ssub.s32 128, 128
          %266 = vsyncadd [#allocation3], %s265
          %s267 = smul.addr %s263, 64
          %s268 = scalar_lea.hbm %s0, %s267
          %s269 = sshll.u32 [#allocation2], 4
          %s270 = int_to_ptr.vmem [resolvable:$true] %s269
          %275 = dma.hbm_to_vmem [thread:$0]  %s268, 128, %s270, [#allocation3], 64, 64, 4
        $region16: #{tpu_custom_call.1} parent=11 // pred_fallthru
          _
      $region12: #{tpu_custom_call.1} parent=5 // pred_fallthru
        _
      %p276 = scmp.lt.s32.totalorder %s23, 2
      // Predicated region
      $region17: #{tpu_custom_call.1} parent=5 // pred_check
        %p277 = pneg %p276
      $region18: #{tpu_custom_call.1} parent=5 // pred_check_branch
        %279 = sbr.rel (%p277) target = $region20
      $region19: #{tpu_custom_call.1} parent=5 // pred_region
        // Predicated region
        $region21: #{tpu_custom_call.1} parent=19 // pred_check
          %p280 = pneg %p81
        $region22: #{tpu_custom_call.1} parent=19 // pred_check_branch
          %282 = sbr.rel (%p280) target = $region24
        $region23: #{tpu_custom_call.1} parent=19 // pred_region
          %s283 = sand.u32 %s23, 1
          %s284 = scalar_lea.sflag [#allocation6], %s283
          %s285 = sand.u32 %s71, 1
          %s286 = smul.addr %s285, 256
          %s287 = scalar_lea.vmem [#allocation5], %s286
          %s289 = ssub.s32 4096, 4096
          %290 = vsyncadd %s284, %s289
          %s291 = smul.addr %s30, 64
          %s292 = smul.addr %s291, 64
          %s293 = scalar_lea.hbm %s1, %s292
          %s294 = sshll.u32 %s287, 4
          %s295 = int_to_ptr.vmem [resolvable:$true] %s294
          %300 = dma.hbm_to_vmem [thread:$0]  %s293, 4096, %s295, %s284, 256, 256, 16
        $region24: #{tpu_custom_call.1} parent=19 // pred_fallthru
          _
        // Predicated region
        $region25: #{tpu_custom_call.1} parent=19 // pred_check
          %p301 = pneg %p107
        $region26: #{tpu_custom_call.1} parent=19 // pred_check_branch
          %303 = sbr.rel (%p301) target = $region28
        $region27: #{tpu_custom_call.1} parent=19 // pred_region
          %s304 = sand.u32 %s23, 1
          %s305 = scalar_lea.sflag [#allocation6], %s304
          %s306 = sand.u32 %s97, 1
          %s307 = smul.addr %s306, 4
          %s308 = scalar_lea.vmem [#allocation7], %s307
          %s310 = ssub.s32 64, 64
          %311 = vsyncadd %s305, %s310
          %s312 = smul.addr %s30, 4
          %s313 = smul.addr %s312, 16
          %s314 = scalar_lea.hbm %s2, %s313
          %s316 = sshll.u32 %s308, 4
          %s317 = int_to_ptr.vmem [resolvable:$true] %s316
          %319 = dma.hbm_to_vmem [thread:$0]  %s314, 64, %s317, %s305
        $region28: #{tpu_custom_call.1} parent=19 // pred_fallthru
          _
        // Predicated region
        $region29: #{tpu_custom_call.1} parent=19 // pred_check
          %p320 = pneg %p133
        $region30: #{tpu_custom_call.1} parent=19 // pred_check_branch
          %322 = sbr.rel (%p320) target = $region32
        $region31: #{tpu_custom_call.1} parent=19 // pred_region
          %s323 = sand.u32 %s23, 1
          %s324 = scalar_lea.sflag [#allocation9], %s323
          %s325 = sand.u32 %s123, 1
          %s326 = smul.addr %s325, 768
          %s327 = scalar_lea.vmem [#allocation8], %s326
          %s329 = ssub.s32 12288, 12288
          %330 = vsyncadd %s324, %s329
          %s331 = smul.addr %s30, 192
          %s332 = smul.addr %s331, 64
          %s333 = scalar_lea.hbm %s3, %s332
          %s334 = sshll.u32 %s327, 4
          %s335 = int_to_ptr.vmem [resolvable:$true] %s334
          %340 = dma.hbm_to_vmem [thread:$0]  %s333, 12288, %s335, %s324, 192, 192, 12
        $region32: #{tpu_custom_call.1} parent=19 // pred_fallthru
          _
        // Predicated region
        $region33: #{tpu_custom_call.1} parent=19 // pred_check
          %p341 = pneg %p159
        $region34: #{tpu_custom_call.1} parent=19 // pred_check_branch
          %343 = sbr.rel (%p341) target = $region36
        $region35: #{tpu_custom_call.1} parent=19 // pred_region
          %p344 = scmp.lt.s32.totalorder %s30, 1
          %s345 = scalar_select %p344, %s30, 1
          %s346 = smul.addr %s345, 3
          %s347 = scalar_lea.vmem %s4, %s346
        $region36: #{tpu_custom_call.1} parent=19 // pred_fallthru
          _
        // Predicated region
        $region37: #{tpu_custom_call.1} parent=19 // pred_check
          %p348 = pneg %p185
        $region38: #{tpu_custom_call.1} parent=19 // pred_check_branch
          %350 = sbr.rel (%p348) target = $region40
        $region39: #{tpu_custom_call.1} parent=19 // pred_region
          %s351 = sand.u32 %s23, 1
          %s352 = scalar_lea.sflag [#allocation9], %s351
          %s353 = sand.u32 %s175, 1
          %s354 = smul.addr %s353, 192
          %s355 = scalar_lea.vmem [#allocation10], %s354
          %s357 = ssub.s32 3072, 3072
          %358 = vsyncadd %s352, %s357
          %s359 = smul.addr %s30, 48
          %s360 = smul.addr %s359, 64
          %s361 = scalar_lea.hbm %s5, %s360
          %s362 = sshll.u32 %s355, 4
          %s363 = int_to_ptr.vmem [resolvable:$true] %s362
          %368 = dma.hbm_to_vmem [thread:$0]  %s361, 3072, %s363, %s352, 64, 64, 4
        $region40: #{tpu_custom_call.1} parent=19 // pred_fallthru
          _
        // Predicated region
        $region41: #{tpu_custom_call.1} parent=19 // pred_check
          %p369 = pneg %p211
        $region42: #{tpu_custom_call.1} parent=19 // pred_check_branch
          %371 = sbr.rel (%p369) target = $region44
        $region43: #{tpu_custom_call.1} parent=19 // pred_region
          %p372 = scmp.lt.s32.totalorder %s30, 1
          %s373 = scalar_select %p372, %s30, 1
          %s374 = scalar_lea.vmem %s6, %s373
        $region44: #{tpu_custom_call.1} parent=19 // pred_fallthru
          _
      $region20: #{tpu_custom_call.1} parent=5 // pred_fallthru
        _
      %p375 = scmp.le.s32.totalorder 1, %s23
      %p376 = scmp.lt.s32.totalorder %s23, 3
      %p377 = pnand %p375, %p376
      %p378 = pneg %p377
      // Predicated region
      $region45: #{tpu_custom_call.1} parent=5 // pred_check
        _
      $region46: #{tpu_custom_call.1} parent=5 // pred_check_branch
        %380 = sbr.rel (%p377) target = $region48
      $region47: #{tpu_custom_call.1} parent=5 // pred_region
        %s381 = ssub.s32 %s23, 1
        // Predicated region
        $region49: #{tpu_custom_call.1} parent=47 // pred_check
          %p382 = pneg %p61
        $region50: #{tpu_custom_call.1} parent=47 // pred_check_branch
          %384 = sbr.rel (%p382) target = $region52
        $region51: #{tpu_custom_call.1} parent=47 // pred_region
          %385 = dma.done [#allocation3], 128
        $region52: #{tpu_custom_call.1} parent=47 // pred_fallthru
          _
        %s386 = sand.u32 %s28, 1
        %s387 = scalar_lea.sflag [#allocation6], %s386
        %s388 = sand.u32 %s74, 1
        %s389 = smul.addr %s388, 256
        %s390 = scalar_lea.vmem [#allocation5], %s389
        // Predicated region
        $region53: #{tpu_custom_call.1} parent=47 // pred_check
          %p391 = pneg %p87
        $region54: #{tpu_custom_call.1} parent=47 // pred_check_branch
          %393 = sbr.rel (%p391) target = $region56
        $region55: #{tpu_custom_call.1} parent=47 // pred_region
          %394 = dma.done %s387, 4096
        $region56: #{tpu_custom_call.1} parent=47 // pred_fallthru
          _
        %s395 = sand.u32 %s28, 1
        %s396 = scalar_lea.sflag [#allocation6], %s395
        %s397 = sand.u32 %s100, 1
        %s398 = smul.addr %s397, 4
        %s399 = scalar_lea.vmem [#allocation7], %s398
        // Predicated region
        $region57: #{tpu_custom_call.1} parent=47 // pred_check
          %p400 = pneg %p113
        $region58: #{tpu_custom_call.1} parent=47 // pred_check_branch
          %402 = sbr.rel (%p400) target = $region60
        $region59: #{tpu_custom_call.1} parent=47 // pred_region
          %403 = dma.done %s396, 64
        $region60: #{tpu_custom_call.1} parent=47 // pred_fallthru
          _
        %s404 = sand.u32 %s28, 1
        %s405 = scalar_lea.sflag [#allocation9], %s404
        %s406 = sand.u32 %s126, 1
        %s407 = smul.addr %s406, 768
        %s408 = scalar_lea.vmem [#allocation8], %s407
        // Predicated region
        $region61: #{tpu_custom_call.1} parent=47 // pred_check
          %p409 = pneg %p139
        $region62: #{tpu_custom_call.1} parent=47 // pred_check_branch
          %411 = sbr.rel (%p409) target = $region64
        $region63: #{tpu_custom_call.1} parent=47 // pred_region
          %412 = dma.done %s405, 12288
        $region64: #{tpu_custom_call.1} parent=47 // pred_fallthru
          _
        %s413 = sand.u32 %s28, 1
        %s414 = scalar_lea.sflag [#allocation9], %s413
        %s415 = sand.u32 %s178, 1
        %s416 = smul.addr %s415, 192
        %s417 = scalar_lea.vmem [#allocation10], %s416
        // Predicated region
        $region65: #{tpu_custom_call.1} parent=47 // pred_check
          %p418 = pneg %p191
        $region66: #{tpu_custom_call.1} parent=47 // pred_check_branch
          %420 = sbr.rel (%p418) target = $region68
        $region67: #{tpu_custom_call.1} parent=47 // pred_region
          %421 = dma.done %s414, 3072
        $region68: #{tpu_custom_call.1} parent=47 // pred_fallthru
          _
        %p422 = pneg %p61
        %p423 = pneg %p58
        %s424 = sand.u32 %s28, 1
        %s425 = scalar_lea.sflag [#allocation6], %s424
        %s426 = sand.u32 %s74, 1
        %s427 = smul.addr %s426, 256
        %s428 = scalar_lea.vmem [#allocation5], %s427
        %p429 = pneg %p87
        %p430 = pneg %p84
        %s431 = sand.u32 %s28, 1
        %s432 = scalar_lea.sflag [#allocation6], %s431
        %s433 = sand.u32 %s100, 1
        %s434 = smul.addr %s433, 4
        %s435 = scalar_lea.vmem [#allocation7], %s434
        %p436 = pneg %p113
        %p437 = pneg %p110
        %s438 = sand.u32 %s28, 1
        %s439 = scalar_lea.sflag [#allocation9], %s438
        %s440 = sand.u32 %s126, 1
        %s441 = smul.addr %s440, 768
        %s442 = scalar_lea.vmem [#allocation8], %s441
        %p443 = pneg %p139
        %p444 = pneg %p136
        %p445 = scmp.lt.s32.totalorder %s32, 1
        %s446 = scalar_select %p445, %s32, 1
        %s447 = smul.addr %s446, 3
        %s448 = scalar_lea.vmem %s4, %s447
        %p449 = pneg %p165
        %p450 = pneg %p162
        %s451 = sand.u32 %s28, 1
        %s452 = scalar_lea.sflag [#allocation9], %s451
        %s453 = sand.u32 %s178, 1
        %s454 = smul.addr %s453, 192
        %s455 = scalar_lea.vmem [#allocation10], %s454
        %p456 = pneg %p191
        %p457 = pneg %p188
        %p458 = scmp.lt.s32.totalorder %s32, 1
        %s459 = scalar_select %p458, %s32, 1
        %s460 = scalar_lea.vmem %s6, %s459
        %p461 = pneg %p217
        %p462 = pneg %p214
        %p463 = pneg %p245
        %p464 = pneg %p242
        %s465 = sand.u32 %s232, 1
        %s466 = scalar_lea.sflag [#allocation4], %s465
        %s467 = sand.u32 %s232, 1
        %s468 = smul.addr %s467, 16
        %s469 = scalar_lea.vmem [#allocation11], %s468
        %s470 = smul.u32 2, %s33
        %p471 = scmp.lt.s32.totalorder %s32, 1
        %s472 = scalar_select %p471, %s32, 1
        %s473 = smul.addr %s472, 3
        %s474 = scalar_lea.vmem %s4, %s473
        %p475 = scmp.lt.s32.totalorder %s32, 1
        %s476 = scalar_select %p475, %s32, 1
        %s477 = scalar_lea.vmem %s6, %s476
        %s478 = smul.u32 2, %s33
        %v480 = vld [vmem:[#allocation2] sm:$0xf]
        %v481 = vld [vmem:[#allocation2 + $0x4] sm:$0xf]
        %v482 = vld [vmem:[%s390] sm:$0xff]
        %v483 = vld [vmem:[%s390 + $0x8] sm:$0xff]
        %v484 = vld [vmem:[%s390 + $0x10] sm:$0xff]
        %v485 = vld [vmem:[%s390 + $0x18] sm:$0xff]
        %v486 = vld [vmem:[%s390 + $0x20] sm:$0xff]
        %v487 = vld [vmem:[%s390 + $0x28] sm:$0xff]
        %v488 = vld [vmem:[%s390 + $0x30] sm:$0xff]
        %v489 = vld [vmem:[%s390 + $0x38] sm:$0xff]
        %v490 = vld [vmem:[%s390 + $0x40] sm:$0xff]
        %v491 = vld [vmem:[%s390 + $0x48] sm:$0xff]
        %v492 = vld [vmem:[%s390 + $0x50] sm:$0xff]
        %v493 = vld [vmem:[%s390 + $0x58] sm:$0xff]
        %v494 = vld [vmem:[%s390 + $0x60] sm:$0xff]
        %v495 = vld [vmem:[%s390 + $0x68] sm:$0xff]
        %v496 = vld [vmem:[%s390 + $0x70] sm:$0xff]
        %v497 = vld [vmem:[%s390 + $0x78] sm:$0xff]
        %v498 = vld [vmem:[%s390 + $0x80] sm:$0xff]
        %v499 = vld [vmem:[%s390 + $0x88] sm:$0xff]
        %v500 = vld [vmem:[%s390 + $0x90] sm:$0xff]
        %v501 = vld [vmem:[%s390 + $0x98] sm:$0xff]
        %v502 = vld [vmem:[%s390 + $0xa0] sm:$0xff]
        %v503 = vld [vmem:[%s390 + $0xa8] sm:$0xff]
        %v504 = vld [vmem:[%s390 + $0xb0] sm:$0xff]
        %v505 = vld [vmem:[%s390 + $0xb8] sm:$0xff]
        %v506 = vld [vmem:[%s390 + $0xc0] sm:$0xff]
        %v507 = vld [vmem:[%s390 + $0xc8] sm:$0xff]
        %v508 = vld [vmem:[%s390 + $0xd0] sm:$0xff]
        %v509 = vld [vmem:[%s390 + $0xd8] sm:$0xff]
        %v510 = vld [vmem:[%s390 + $0xe0] sm:$0xff]
        %v511 = vld [vmem:[%s390 + $0xe8] sm:$0xff]
        %v512 = vld [vmem:[%s390 + $0xf0] sm:$0xff]
        %v513 = vld [vmem:[%s390 + $0xf8] sm:$0xff]
        %v514 = vld [vmem:[%s399] sm:$0xf]
        %v516 = vlaneseq
        %v517 = vshrl.u32 %v516, 7
        %v518 = vsub.s32 0, %v517
        %v519 = vrot.slane %v514, %v518
        %v520 = vlaneseq
        %v521 = vshrl.u32 %v520, 7
        %v522 = vsub.s32 1, %v521
        %v523 = vrot.slane %v514, %v522
        %v524 = vlaneseq
        %v525 = vshrl.u32 %v524, 7
        %v526 = vsub.s32 2, %v525
        %v527 = vrot.slane %v514, %v526
        %v528 = vlaneseq
        %v529 = vshrl.u32 %v528, 7
        %v530 = vsub.s32 3, %v529
        %v531 = vrot.slane %v514, %v530
        %v538 = vunpack.c.l.b16 %v480
        %v539 = vunpack.c.l.b16 %v481
        %v540 = vpack.c.b16 %v539, %v538
        %v574 = vunpack.c.l.b16 %v482
        %v575 = vunpack.c.h.b16 %v482
        %v576 = vunpack.c.l.b16 %v483
        %v577 = vunpack.c.h.b16 %v483
        %v578 = vunpack.c.l.b16 %v484
        %v579 = vunpack.c.h.b16 %v484
        %v580 = vunpack.c.l.b16 %v485
        %v581 = vunpack.c.h.b16 %v485
        %v582 = vunpack.c.l.b16 %v486
        %v583 = vunpack.c.h.b16 %v486
        %v584 = vunpack.c.l.b16 %v487
        %v585 = vunpack.c.h.b16 %v487
        %v586 = vunpack.c.l.b16 %v488
        %v587 = vunpack.c.h.b16 %v488
        %v588 = vunpack.c.l.b16 %v489
        %v589 = vunpack.c.h.b16 %v489
        %v590 = vunpack.c.l.b16 %v490
        %v591 = vunpack.c.h.b16 %v490
        %v592 = vunpack.c.l.b16 %v491
        %v593 = vunpack.c.h.b16 %v491
        %v594 = vunpack.c.l.b16 %v492
        %v595 = vunpack.c.h.b16 %v492
        %v596 = vunpack.c.l.b16 %v493
        %v597 = vunpack.c.h.b16 %v493
        %v598 = vunpack.c.l.b16 %v494
        %v599 = vunpack.c.h.b16 %v494
        %v600 = vunpack.c.l.b16 %v495
        %v601 = vunpack.c.h.b16 %v495
        %v602 = vunpack.c.l.b16 %v496
        %v603 = vunpack.c.h.b16 %v496
        %v604 = vunpack.c.l.b16 %v497
        %v605 = vunpack.c.h.b16 %v497
        %v606 = vunpack.c.l.b16 %v498
        %v607 = vunpack.c.h.b16 %v498
        %v608 = vunpack.c.l.b16 %v499
        %v609 = vunpack.c.h.b16 %v499
        %v610 = vunpack.c.l.b16 %v500
        %v611 = vunpack.c.h.b16 %v500
        %v612 = vunpack.c.l.b16 %v501
        %v613 = vunpack.c.h.b16 %v501
        %v614 = vunpack.c.l.b16 %v502
        %v615 = vunpack.c.h.b16 %v502
        %v616 = vunpack.c.l.b16 %v503
        %v617 = vunpack.c.h.b16 %v503
        %v618 = vunpack.c.l.b16 %v504
        %v619 = vunpack.c.h.b16 %v504
        %v620 = vunpack.c.l.b16 %v505
        %v621 = vunpack.c.h.b16 %v505
        %v622 = vunpack.c.l.b16 %v506
        %v623 = vunpack.c.h.b16 %v506
        %v624 = vunpack.c.l.b16 %v507
        %v625 = vunpack.c.h.b16 %v507
        %v626 = vunpack.c.l.b16 %v508
        %v627 = vunpack.c.h.b16 %v508
        %v628 = vunpack.c.l.b16 %v509
        %v629 = vunpack.c.h.b16 %v509
        %v630 = vunpack.c.l.b16 %v510
        %v631 = vunpack.c.h.b16 %v510
        %v632 = vunpack.c.l.b16 %v511
        %v633 = vunpack.c.h.b16 %v511
        %v634 = vunpack.c.l.b16 %v512
        %v635 = vunpack.c.h.b16 %v512
        %v636 = vunpack.c.l.b16 %v513
        %v637 = vunpack.c.h.b16 %v513
        %v638 = vpack.c.b16 %v578, %v574
        %v639 = vpack.c.b16 %v579, %v575
        %v640 = vpack.c.b16 %v580, %v576
        %v641 = vpack.c.b16 %v581, %v577
        %v642 = vpack.c.b16 %v586, %v582
        %v643 = vpack.c.b16 %v587, %v583
        %v644 = vpack.c.b16 %v588, %v584
        %v645 = vpack.c.b16 %v589, %v585
        %v646 = vpack.c.b16 %v594, %v590
        %v647 = vpack.c.b16 %v595, %v591
        %v648 = vpack.c.b16 %v596, %v592
        %v649 = vpack.c.b16 %v597, %v593
        %v650 = vpack.c.b16 %v602, %v598
        %v651 = vpack.c.b16 %v603, %v599
        %v652 = vpack.c.b16 %v604, %v600
        %v653 = vpack.c.b16 %v605, %v601
        %v654 = vpack.c.b16 %v610, %v606
        %v655 = vpack.c.b16 %v611, %v607
        %v656 = vpack.c.b16 %v612, %v608
        %v657 = vpack.c.b16 %v613, %v609
        %v658 = vpack.c.b16 %v618, %v614
        %v659 = vpack.c.b16 %v619, %v615
        %v660 = vpack.c.b16 %v620, %v616
        %v661 = vpack.c.b16 %v621, %v617
        %v662 = vpack.c.b16 %v626, %v622
        %v663 = vpack.c.b16 %v627, %v623
        %v664 = vpack.c.b16 %v628, %v624
        %v665 = vpack.c.b16 %v629, %v625
        %v666 = vpack.c.b16 %v634, %v630
        %v667 = vpack.c.b16 %v635, %v631
        %v668 = vpack.c.b16 %v636, %v632
        %v669 = vpack.c.b16 %v637, %v633
        %702 = vmatprep.subr.bf16.mxu0 %v667
        %703 = vmatpush1.bf16.msra.mxu0 %v666
        %704 = vmatprep.subr.bf16.mxu0 %v663
        %705 = vmatpush1.bf16.msra.mxu0 %v662
        %706 = vmatprep.subr.bf16.mxu0 %v659
        %707 = vmatpush1.bf16.msra.mxu0 %v658
        %708 = vmatprep.subr.bf16.mxu0 %v655
        %709 = vmatpush1.bf16.msra.mxu0 %v654
        %710 = vmatprep.subr.bf16.mxu0 %v651
        %711 = vmatpush1.bf16.msra.mxu0 %v650
        %712 = vmatprep.subr.bf16.mxu0 %v647
        %713 = vmatpush1.bf16.msra.mxu0 %v646
        %714 = vmatprep.subr.bf16.mxu0 %v643
        %715 = vmatpush1.bf16.msra.mxu0 %v642
        %716 = vmatprep.subr.bf16.mxu0 %v639
        %717 = vmatpush1.bf16.msra.mxu0 %v638
        %718 = vmatprep.subr.bf16.mxu0 0
        %719 = vmatpush2.bf16.msra.mxu0 0
        %720 = vmatprep.subr.bf16.mxu0 0
        %721 = vmatpush2.bf16.msra.mxu0 0
        %722 = vmatprep.subr.bf16.mxu0 0
        %723 = vmatpush2.bf16.msra.mxu0 0
        %724 = vmatprep.subr.bf16.mxu0 0
        %725 = vmatpush2.bf16.msra.mxu0 0
        %726 = vmatprep.subr.bf16.mxu0 0
        %727 = vmatpush2.bf16.msra.mxu0 0
        %728 = vmatprep.subr.bf16.mxu0 0
        %729 = vmatpush2.bf16.msra.mxu0 0
        %730 = vmatprep.subr.bf16.mxu0 0
        %731 = vmatpush2.bf16.msra.mxu0 0
        %732 = vmatprep.subr.bf16.mxu0 0
        %733 = vmatpush2.bf16.msra.mxu0 0
        %734 = vmatprep.mubr.bf16.mxu0 0
        %735 = vmatmul.mubr.bf16.gmra.mxu0 %v540
        %v736 = vpop.f32.mrf.mxu0
        %v737 = vadd.f32 %v519, %v736
        %v738 = vpop.f32.mrf.mxu0
        %v739 = vadd.f32 %v523, %v738
        %v740 = vpop.f32.mrf.mxu0
        %v741 = vadd.f32 %v519, %v740
        %v742 = vpop.f32.mrf.mxu0
        %v743 = vadd.f32 %v523, %v742
        %744 = vdwg.mxu0
        %745 = vmatprep.subr.bf16.mxu0 %v669
        %746 = vmatpush1.bf16.msra.mxu0 %v668
        %747 = vmatprep.subr.bf16.mxu0 %v665
        %748 = vmatpush1.bf16.msra.mxu0 %v664
        %749 = vmatprep.subr.bf16.mxu0 %v661
        %750 = vmatpush1.bf16.msra.mxu0 %v660
        %751 = vmatprep.subr.bf16.mxu0 %v657
        %752 = vmatpush1.bf16.msra.mxu0 %v656
        %753 = vmatprep.subr.bf16.mxu0 %v653
        %754 = vmatpush1.bf16.msra.mxu0 %v652
        %755 = vmatprep.subr.bf16.mxu0 %v649
        %756 = vmatpush1.bf16.msra.mxu0 %v648
        %757 = vmatprep.subr.bf16.mxu0 %v645
        %758 = vmatpush1.bf16.msra.mxu0 %v644
        %759 = vmatprep.subr.bf16.mxu0 %v641
        %760 = vmatpush1.bf16.msra.mxu0 %v640
        %761 = vmatprep.subr.bf16.mxu0 0
        %762 = vmatpush2.bf16.msra.mxu0 0
        %763 = vmatprep.subr.bf16.mxu0 0
        %764 = vmatpush2.bf16.msra.mxu0 0
        %765 = vmatprep.subr.bf16.mxu0 0
        %766 = vmatpush2.bf16.msra.mxu0 0
        %767 = vmatprep.subr.bf16.mxu0 0
        %768 = vmatpush2.bf16.msra.mxu0 0
        %769 = vmatprep.subr.bf16.mxu0 0
        %770 = vmatpush2.bf16.msra.mxu0 0
        %771 = vmatprep.subr.bf16.mxu0 0
        %772 = vmatpush2.bf16.msra.mxu0 0
        %773 = vmatprep.subr.bf16.mxu0 0
        %774 = vmatpush2.bf16.msra.mxu0 0
        %775 = vmatprep.subr.bf16.mxu0 0
        %776 = vmatpush2.bf16.msra.mxu0 0
        %777 = vmatprep.mubr.bf16.mxu0 0
        %778 = vmatmul.mubr.bf16.gmra.mxu0 %v540
        %v779 = vpop.f32.mrf.mxu0
        %v780 = vadd.f32 %v527, %v779
        %v781 = vpop.f32.mrf.mxu0
        %v782 = vadd.f32 %v531, %v781
        %v783 = vpop.f32.mrf.mxu0
        %v784 = vadd.f32 %v527, %v783
        %v785 = vpop.f32.mrf.mxu0
        %v786 = vadd.f32 %v531, %v785
        %787 = vdwg.mxu0
        %v788 = vmax.f32 %v737, 0.0
        %v789 = vmax.f32 %v739, 0.0
        %v790 = vmax.f32 %v780, 0.0
        %v791 = vmax.f32 %v782, 0.0
        %v792 = vmax.f32 %v741, 0.0
        %v793 = vmax.f32 %v743, 0.0
        %v794 = vmax.f32 %v784, 0.0
        %v795 = vmax.f32 %v786, 0.0
        %v796 = vpack.c.bf16 %v792, %v788
        %v797 = vpack.c.bf16 %v793, %v789
        %v798 = vpack.c.bf16 %v794, %v790
        %v799 = vpack.c.bf16 %v795, %v791
        %v800 = vld [vmem:[%s408] sm:$0xff]
        %v801 = vld [vmem:[%s408 + $0x8] sm:$0xf]
        %v802 = vld [vmem:[%s408 + $0xc] sm:$0xff]
        %v803 = vld [vmem:[%s408 + $0x14] sm:$0xf]
        %v804 = vld [vmem:[%s408 + $0x18] sm:$0xff]
        %v805 = vld [vmem:[%s408 + $0x20] sm:$0xf]
        %v806 = vld [vmem:[%s408 + $0x24] sm:$0xff]
        %v807 = vld [vmem:[%s408 + $0x2c] sm:$0xf]
        %v808 = vld [vmem:[%s408 + $0x30] sm:$0xff]
        %v809 = vld [vmem:[%s408 + $0x38] sm:$0xf]
        %v810 = vld [vmem:[%s408 + $0x3c] sm:$0xff]
        %v811 = vld [vmem:[%s408 + $0x44] sm:$0xf]
        %v812 = vld [vmem:[%s408 + $0x48] sm:$0xff]
        %v813 = vld [vmem:[%s408 + $0x50] sm:$0xf]
        %v814 = vld [vmem:[%s408 + $0x54] sm:$0xff]
        %v815 = vld [vmem:[%s408 + $0x5c] sm:$0xf]
        %v816 = vld [vmem:[%s408 + $0x60] sm:$0xff]
        %v817 = vld [vmem:[%s408 + $0x68] sm:$0xf]
        %v818 = vld [vmem:[%s408 + $0x6c] sm:$0xff]
        %v819 = vld [vmem:[%s408 + $0x74] sm:$0xf]
        %v820 = vld [vmem:[%s408 + $0x78] sm:$0xff]
        %v821 = vld [vmem:[%s408 + $0x80] sm:$0xf]
        %v822 = vld [vmem:[%s408 + $0x84] sm:$0xff]
        %v823 = vld [vmem:[%s408 + $0x8c] sm:$0xf]
        %v824 = vld [vmem:[%s408 + $0x90] sm:$0xff]
        %v825 = vld [vmem:[%s408 + $0x98] sm:$0xf]
        %v826 = vld [vmem:[%s408 + $0x9c] sm:$0xff]
        %v827 = vld [vmem:[%s408 + $0xa4] sm:$0xf]
        %v828 = vld [vmem:[%s408 + $0xa8] sm:$0xff]
        %v829 = vld [vmem:[%s408 + $0xb0] sm:$0xf]
        %v830 = vld [vmem:[%s408 + $0xb4] sm:$0xff]
        %v831 = vld [vmem:[%s408 + $0xbc] sm:$0xf]
        %v832 = vld [vmem:[%s408 + $0xc0] sm:$0xff]
        %v833 = vld [vmem:[%s408 + $0xc8] sm:$0xf]
        %v834 = vld [vmem:[%s408 + $0xcc] sm:$0xff]
        %v835 = vld [vmem:[%s408 + $0xd4] sm:$0xf]
        %v836 = vld [vmem:[%s408 + $0xd8] sm:$0xff]
        %v837 = vld [vmem:[%s408 + $0xe0] sm:$0xf]
        %v838 = vld [vmem:[%s408 + $0xe4] sm:$0xff]
        %v839 = vld [vmem:[%s408 + $0xec] sm:$0xf]
        %v840 = vld [vmem:[%s408 + $0xf0] sm:$0xff]
        %v841 = vld [vmem:[%s408 + $0xf8] sm:$0xf]
        %v842 = vld [vmem:[%s408 + $0xfc] sm:$0xff]
        %v843 = vld [vmem:[%s408 + $0x104] sm:$0xf]
        %v844 = vld [vmem:[%s408 + $0x108] sm:$0xff]
        %v845 = vld [vmem:[%s408 + $0x110] sm:$0xf]
        %v846 = vld [vmem:[%s408 + $0x114] sm:$0xff]
        %v847 = vld [vmem:[%s408 + $0x11c] sm:$0xf]
        %v848 = vld [vmem:[%s408 + $0x120] sm:$0xff]
        %v849 = vld [vmem:[%s408 + $0x128] sm:$0xf]
        %v850 = vld [vmem:[%s408 + $0x12c] sm:$0xff]
        %v851 = vld [vmem:[%s408 + $0x134] sm:$0xf]
        %v852 = vld [vmem:[%s408 + $0x138] sm:$0xff]
        %v853 = vld [vmem:[%s408 + $0x140] sm:$0xf]
        %v854 = vld [vmem:[%s408 + $0x144] sm:$0xff]
        %v855 = vld [vmem:[%s408 + $0x14c] sm:$0xf]
        %v856 = vld [vmem:[%s408 + $0x150] sm:$0xff]
        %v857 = vld [vmem:[%s408 + $0x158] sm:$0xf]
        %v858 = vld [vmem:[%s408 + $0x15c] sm:$0xff]
        %v859 = vld [vmem:[%s408 + $0x164] sm:$0xf]
        %v860 = vld [vmem:[%s408 + $0x168] sm:$0xff]
        %v861 = vld [vmem:[%s408 + $0x170] sm:$0xf]
        %v862 = vld [vmem:[%s408 + $0x174] sm:$0xff]
        %v863 = vld [vmem:[%s408 + $0x17c] sm:$0xf]
        %v864 = vld [vmem:[%s408 + $0x180] sm:$0xff]
        %v865 = vld [vmem:[%s408 + $0x188] sm:$0xf]
        %v866 = vld [vmem:[%s408 + $0x18c] sm:$0xff]
        %v867 = vld [vmem:[%s408 + $0x194] sm:$0xf]
        %v868 = vld [vmem:[%s408 + $0x198] sm:$0xff]
        %v869 = vld [vmem:[%s408 + $0x1a0] sm:$0xf]
        %v870 = vld [vmem:[%s408 + $0x1a4] sm:$0xff]
        %v871 = vld [vmem:[%s408 + $0x1ac] sm:$0xf]
        %v872 = vld [vmem:[%s408 + $0x1b0] sm:$0xff]
        %v873 = vld [vmem:[%s408 + $0x1b8] sm:$0xf]
        %v874 = vld [vmem:[%s408 + $0x1bc] sm:$0xff]
        %v875 = vld [vmem:[%s408 + $0x1c4] sm:$0xf]
        %v876 = vld [vmem:[%s408 + $0x1c8] sm:$0xff]
        %v877 = vld [vmem:[%s408 + $0x1d0] sm:$0xf]
        %v878 = vld [vmem:[%s408 + $0x1d4] sm:$0xff]
        %v879 = vld [vmem:[%s408 + $0x1dc] sm:$0xf]
        %v880 = vld [vmem:[%s408 + $0x1e0] sm:$0xff]
        %v881 = vld [vmem:[%s408 + $0x1e8] sm:$0xf]
        %v882 = vld [vmem:[%s408 + $0x1ec] sm:$0xff]
        %v883 = vld [vmem:[%s408 + $0x1f4] sm:$0xf]
        %v884 = vld [vmem:[%s408 + $0x1f8] sm:$0xff]
        %v885 = vld [vmem:[%s408 + $0x200] sm:$0xf]
        %v886 = vld [vmem:[%s408 + $0x204] sm:$0xff]
        %v887 = vld [vmem:[%s408 + $0x20c] sm:$0xf]
        %v888 = vld [vmem:[%s408 + $0x210] sm:$0xff]
        %v889 = vld [vmem:[%s408 + $0x218] sm:$0xf]
        %v890 = vld [vmem:[%s408 + $0x21c] sm:$0xff]
        %v891 = vld [vmem:[%s408 + $0x224] sm:$0xf]
        %v892 = vld [vmem:[%s408 + $0x228] sm:$0xff]
        %v893 = vld [vmem:[%s408 + $0x230] sm:$0xf]
        %v894 = vld [vmem:[%s408 + $0x234] sm:$0xff]
        %v895 = vld [vmem:[%s408 + $0x23c] sm:$0xf]
        %v896 = vld [vmem:[%s408 + $0x240] sm:$0xff]
        %v897 = vld [vmem:[%s408 + $0x248] sm:$0xf]
        %v898 = vld [vmem:[%s408 + $0x24c] sm:$0xff]
        %v899 = vld [vmem:[%s408 + $0x254] sm:$0xf]
        %v900 = vld [vmem:[%s408 + $0x258] sm:$0xff]
        %v901 = vld [vmem:[%s408 + $0x260] sm:$0xf]
        %v902 = vld [vmem:[%s408 + $0x264] sm:$0xff]
        %v903 = vld [vmem:[%s408 + $0x26c] sm:$0xf]
        %v904 = vld [vmem:[%s408 + $0x270] sm:$0xff]
        %v905 = vld [vmem:[%s408 + $0x278] sm:$0xf]
        %v906 = vld [vmem:[%s408 + $0x27c] sm:$0xff]
        %v907 = vld [vmem:[%s408 + $0x284] sm:$0xf]
        %v908 = vld [vmem:[%s408 + $0x288] sm:$0xff]
        %v909 = vld [vmem:[%s408 + $0x290] sm:$0xf]
        %v910 = vld [vmem:[%s408 + $0x294] sm:$0xff]
        %v911 = vld [vmem:[%s408 + $0x29c] sm:$0xf]
        %v912 = vld [vmem:[%s408 + $0x2a0] sm:$0xff]
        %v913 = vld [vmem:[%s408 + $0x2a8] sm:$0xf]
        %v914 = vld [vmem:[%s408 + $0x2ac] sm:$0xff]
        %v915 = vld [vmem:[%s408 + $0x2b4] sm:$0xf]
        %v916 = vld [vmem:[%s408 + $0x2b8] sm:$0xff]
        %v917 = vld [vmem:[%s408 + $0x2c0] sm:$0xf]
        %v918 = vld [vmem:[%s408 + $0x2c4] sm:$0xff]
        %v919 = vld [vmem:[%s408 + $0x2cc] sm:$0xf]
        %v920 = vld [vmem:[%s408 + $0x2d0] sm:$0xff]
        %v921 = vld [vmem:[%s408 + $0x2d8] sm:$0xf]
        %v922 = vld [vmem:[%s408 + $0x2dc] sm:$0xff]
        %v923 = vld [vmem:[%s408 + $0x2e4] sm:$0xf]
        %v924 = vld [vmem:[%s408 + $0x2e8] sm:$0xff]
        %v925 = vld [vmem:[%s408 + $0x2f0] sm:$0xf]
        %v926 = vld [vmem:[%s408 + $0x2f4] sm:$0xff]
        %v927 = vld [vmem:[%s408 + $0x2fc] sm:$0xf]
        %v928 = vld [vmem:[%s474] sm:$0x7]
        %v930 = vlaneseq
        %v931 = vshrl.u32 %v930, 7
        %v932 = vsub.s32 0, %v931
        %v933 = vrot.slane %v928, %v932
        %v934 = vlaneseq
        %v935 = vshrl.u32 %v934, 7
        %v936 = vsub.s32 1, %v935
        %v937 = vrot.slane %v928, %v936
        %v938 = vlaneseq
        %v939 = vshrl.u32 %v938, 7
        %v940 = vsub.s32 2, %v939
        %v941 = vrot.slane %v928, %v940
        %v1073 = vunpack.c.l.b16 %v800
        %v1074 = vunpack.c.h.b16 %v800
        %v1075 = vunpack.c.l.b16 %v801
        %v1076 = vunpack.c.l.b16 %v802
        %v1077 = vunpack.c.h.b16 %v802
        %v1078 = vunpack.c.l.b16 %v803
        %v1079 = vunpack.c.l.b16 %v804
        %v1080 = vunpack.c.h.b16 %v804
        %v1081 = vunpack.c.l.b16 %v805
        %v1082 = vunpack.c.l.b16 %v806
        %v1083 = vunpack.c.h.b16 %v806
        %v1084 = vunpack.c.l.b16 %v807
        %v1085 = vunpack.c.l.b16 %v808
        %v1086 = vunpack.c.h.b16 %v808
        %v1087 = vunpack.c.l.b16 %v809
        %v1088 = vunpack.c.l.b16 %v810
        %v1089 = vunpack.c.h.b16 %v810
        %v1090 = vunpack.c.l.b16 %v811
        %v1091 = vunpack.c.l.b16 %v812
        %v1092 = vunpack.c.h.b16 %v812
        %v1093 = vunpack.c.l.b16 %v813
        %v1094 = vunpack.c.l.b16 %v814
        %v1095 = vunpack.c.h.b16 %v814
        %v1096 = vunpack.c.l.b16 %v815
        %v1097 = vunpack.c.l.b16 %v816
        %v1098 = vunpack.c.h.b16 %v816
        %v1099 = vunpack.c.l.b16 %v817
        %v1100 = vunpack.c.l.b16 %v818
        %v1101 = vunpack.c.h.b16 %v818
        %v1102 = vunpack.c.l.b16 %v819
        %v1103 = vunpack.c.l.b16 %v820
        %v1104 = vunpack.c.h.b16 %v820
        %v1105 = vunpack.c.l.b16 %v821
        %v1106 = vunpack.c.l.b16 %v822
        %v1107 = vunpack.c.h.b16 %v822
        %v1108 = vunpack.c.l.b16 %v823
        %v1109 = vunpack.c.l.b16 %v824
        %v1110 = vunpack.c.h.b16 %v824
        %v1111 = vunpack.c.l.b16 %v825
        %v1112 = vunpack.c.l.b16 %v826
        %v1113 = vunpack.c.h.b16 %v826
        %v1114 = vunpack.c.l.b16 %v827
        %v1115 = vunpack.c.l.b16 %v828
        %v1116 = vunpack.c.h.b16 %v828
        %v1117 = vunpack.c.l.b16 %v829
        %v1118 = vunpack.c.l.b16 %v830
        %v1119 = vunpack.c.h.b16 %v830
        %v1120 = vunpack.c.l.b16 %v831
        %v1121 = vunpack.c.l.b16 %v832
        %v1122 = vunpack.c.h.b16 %v832
        %v1123 = vunpack.c.l.b16 %v833
        %v1124 = vunpack.c.l.b16 %v834
        %v1125 = vunpack.c.h.b16 %v834
        %v1126 = vunpack.c.l.b16 %v835
        %v1127 = vunpack.c.l.b16 %v836
        %v1128 = vunpack.c.h.b16 %v836
        %v1129 = vunpack.c.l.b16 %v837
        %v1130 = vunpack.c.l.b16 %v838
        %v1131 = vunpack.c.h.b16 %v838
        %v1132 = vunpack.c.l.b16 %v839
        %v1133 = vunpack.c.l.b16 %v840
        %v1134 = vunpack.c.h.b16 %v840
        %v1135 = vunpack.c.l.b16 %v841
        %v1136 = vunpack.c.l.b16 %v842
        %v1137 = vunpack.c.h.b16 %v842
        %v1138 = vunpack.c.l.b16 %v843
        %v1139 = vunpack.c.l.b16 %v844
        %v1140 = vunpack.c.h.b16 %v844
        %v1141 = vunpack.c.l.b16 %v845
        %v1142 = vunpack.c.l.b16 %v846
        %v1143 = vunpack.c.h.b16 %v846
        %v1144 = vunpack.c.l.b16 %v847
        %v1145 = vunpack.c.l.b16 %v848
        %v1146 = vunpack.c.h.b16 %v848
        %v1147 = vunpack.c.l.b16 %v849
        %v1148 = vunpack.c.l.b16 %v850
        %v1149 = vunpack.c.h.b16 %v850
        %v1150 = vunpack.c.l.b16 %v851
        %v1151 = vunpack.c.l.b16 %v852
        %v1152 = vunpack.c.h.b16 %v852
        %v1153 = vunpack.c.l.b16 %v853
        %v1154 = vunpack.c.l.b16 %v854
        %v1155 = vunpack.c.h.b16 %v854
        %v1156 = vunpack.c.l.b16 %v855
        %v1157 = vunpack.c.l.b16 %v856
        %v1158 = vunpack.c.h.b16 %v856
        %v1159 = vunpack.c.l.b16 %v857
        %v1160 = vunpack.c.l.b16 %v858
        %v1161 = vunpack.c.h.b16 %v858
        %v1162 = vunpack.c.l.b16 %v859
        %v1163 = vunpack.c.l.b16 %v860
        %v1164 = vunpack.c.h.b16 %v860
        %v1165 = vunpack.c.l.b16 %v861
        %v1166 = vunpack.c.l.b16 %v862
        %v1167 = vunpack.c.h.b16 %v862
        %v1168 = vunpack.c.l.b16 %v863
        %v1169 = vunpack.c.l.b16 %v864
        %v1170 = vunpack.c.h.b16 %v864
        %v1171 = vunpack.c.l.b16 %v865
        %v1172 = vunpack.c.l.b16 %v866
        %v1173 = vunpack.c.h.b16 %v866
        %v1174 = vunpack.c.l.b16 %v867
        %v1175 = vunpack.c.l.b16 %v868
        %v1176 = vunpack.c.h.b16 %v868
        %v1177 = vunpack.c.l.b16 %v869
        %v1178 = vunpack.c.l.b16 %v870
        %v1179 = vunpack.c.h.b16 %v870
        %v1180 = vunpack.c.l.b16 %v871
        %v1181 = vunpack.c.l.b16 %v872
        %v1182 = vunpack.c.h.b16 %v872
        %v1183 = vunpack.c.l.b16 %v873
        %v1184 = vunpack.c.l.b16 %v874
        %v1185 = vunpack.c.h.b16 %v874
        %v1186 = vunpack.c.l.b16 %v875
        %v1187 = vunpack.c.l.b16 %v876
        %v1188 = vunpack.c.h.b16 %v876
        %v1189 = vunpack.c.l.b16 %v877
        %v1190 = vunpack.c.l.b16 %v878
        %v1191 = vunpack.c.h.b16 %v878
        %v1192 = vunpack.c.l.b16 %v879
        %v1193 = vunpack.c.l.b16 %v880
        %v1194 = vunpack.c.h.b16 %v880
        %v1195 = vunpack.c.l.b16 %v881
        %v1196 = vunpack.c.l.b16 %v882
        %v1197 = vunpack.c.h.b16 %v882
        %v1198 = vunpack.c.l.b16 %v883
        %v1199 = vunpack.c.l.b16 %v884
        %v1200 = vunpack.c.h.b16 %v884
        %v1201 = vunpack.c.l.b16 %v885
        %v1202 = vunpack.c.l.b16 %v886
        %v1203 = vunpack.c.h.b16 %v886
        %v1204 = vunpack.c.l.b16 %v887
        %v1205 = vunpack.c.l.b16 %v888
        %v1206 = vunpack.c.h.b16 %v888
        %v1207 = vunpack.c.l.b16 %v889
        %v1208 = vunpack.c.l.b16 %v890
        %v1209 = vunpack.c.h.b16 %v890
        %v1210 = vunpack.c.l.b16 %v891
        %v1211 = vunpack.c.l.b16 %v892
        %v1212 = vunpack.c.h.b16 %v892
        %v1213 = vunpack.c.l.b16 %v893
        %v1214 = vunpack.c.l.b16 %v894
        %v1215 = vunpack.c.h.b16 %v894
        %v1216 = vunpack.c.l.b16 %v895
        %v1217 = vunpack.c.l.b16 %v896
        %v1218 = vunpack.c.h.b16 %v896
        %v1219 = vunpack.c.l.b16 %v897
        %v1220 = vunpack.c.l.b16 %v898
        %v1221 = vunpack.c.h.b16 %v898
        %v1222 = vunpack.c.l.b16 %v899
        %v1223 = vunpack.c.l.b16 %v900
        %v1224 = vunpack.c.h.b16 %v900
        %v1225 = vunpack.c.l.b16 %v901
        %v1226 = vunpack.c.l.b16 %v902
        %v1227 = vunpack.c.h.b16 %v902
        %v1228 = vunpack.c.l.b16 %v903
        %v1229 = vunpack.c.l.b16 %v904
        %v1230 = vunpack.c.h.b16 %v904
        %v1231 = vunpack.c.l.b16 %v905
        %v1232 = vunpack.c.l.b16 %v906
        %v1233 = vunpack.c.h.b16 %v906
        %v1234 = vunpack.c.l.b16 %v907
        %v1235 = vunpack.c.l.b16 %v908
        %v1236 = vunpack.c.h.b16 %v908
        %v1237 = vunpack.c.l.b16 %v909
        %v1238 = vunpack.c.l.b16 %v910
        %v1239 = vunpack.c.h.b16 %v910
        %v1240 = vunpack.c.l.b16 %v911
        %v1241 = vunpack.c.l.b16 %v912
        %v1242 = vunpack.c.h.b16 %v912
        %v1243 = vunpack.c.l.b16 %v913
        %v1244 = vunpack.c.l.b16 %v914
        %v1245 = vunpack.c.h.b16 %v914
        %v1246 = vunpack.c.l.b16 %v915
        %v1247 = vunpack.c.l.b16 %v916
        %v1248 = vunpack.c.h.b16 %v916
        %v1249 = vunpack.c.l.b16 %v917
        %v1250 = vunpack.c.l.b16 %v918
        %v1251 = vunpack.c.h.b16 %v918
        %v1252 = vunpack.c.l.b16 %v919
        %v1253 = vunpack.c.l.b16 %v920
        %v1254 = vunpack.c.h.b16 %v920
        %v1255 = vunpack.c.l.b16 %v921
        %v1256 = vunpack.c.l.b16 %v922
        %v1257 = vunpack.c.h.b16 %v922
        %v1258 = vunpack.c.l.b16 %v923
        %v1259 = vunpack.c.l.b16 %v924
        %v1260 = vunpack.c.h.b16 %v924
        %v1261 = vunpack.c.l.b16 %v925
        %v1262 = vunpack.c.l.b16 %v926
        %v1263 = vunpack.c.h.b16 %v926
        %v1264 = vunpack.c.l.b16 %v927
        %v1265 = vpack.c.b16 %v1076, %v1073
        %v1266 = vpack.c.b16 %v1077, %v1074
        %v1267 = vpack.c.b16 %v1078, %v1075
        %v1268 = vpack.c.b16 %v1082, %v1079
        %v1269 = vpack.c.b16 %v1083, %v1080
        %v1270 = vpack.c.b16 %v1084, %v1081
        %v1271 = vpack.c.b16 %v1088, %v1085
        %v1272 = vpack.c.b16 %v1089, %v1086
        %v1273 = vpack.c.b16 %v1090, %v1087
        %v1274 = vpack.c.b16 %v1094, %v1091
        %v1275 = vpack.c.b16 %v1095, %v1092
        %v1276 = vpack.c.b16 %v1096, %v1093
        %v1277 = vpack.c.b16 %v1100, %v1097
        %v1278 = vpack.c.b16 %v1101, %v1098
        %v1279 = vpack.c.b16 %v1102, %v1099
        %v1280 = vpack.c.b16 %v1106, %v1103
        %v1281 = vpack.c.b16 %v1107, %v1104
        %v1282 = vpack.c.b16 %v1108, %v1105
        %v1283 = vpack.c.b16 %v1112, %v1109
        %v1284 = vpack.c.b16 %v1113, %v1110
        %v1285 = vpack.c.b16 %v1114, %v1111
        %v1286 = vpack.c.b16 %v1118, %v1115
        %v1287 = vpack.c.b16 %v1119, %v1116
        %v1288 = vpack.c.b16 %v1120, %v1117
        %v1289 = vpack.c.b16 %v1124, %v1121
        %v1290 = vpack.c.b16 %v1125, %v1122
        %v1291 = vpack.c.b16 %v1126, %v1123
        %v1292 = vpack.c.b16 %v1130, %v1127
        %v1293 = vpack.c.b16 %v1131, %v1128
        %v1294 = vpack.c.b16 %v1132, %v1129
        %v1295 = vpack.c.b16 %v1136, %v1133
        %v1296 = vpack.c.b16 %v1137, %v1134
        %v1297 = vpack.c.b16 %v1138, %v1135
        %v1298 = vpack.c.b16 %v1142, %v1139
        %v1299 = vpack.c.b16 %v1143, %v1140
        %v1300 = vpack.c.b16 %v1144, %v1141
        %v1301 = vpack.c.b16 %v1148, %v1145
        %v1302 = vpack.c.b16 %v1149, %v1146
        %v1303 = vpack.c.b16 %v1150, %v1147
        %v1304 = vpack.c.b16 %v1154, %v1151
        %v1305 = vpack.c.b16 %v1155, %v1152
        %v1306 = vpack.c.b16 %v1156, %v1153
        %v1307 = vpack.c.b16 %v1160, %v1157
        %v1308 = vpack.c.b16 %v1161, %v1158
        %v1309 = vpack.c.b16 %v1162, %v1159
        %v1310 = vpack.c.b16 %v1166, %v1163
        %v1311 = vpack.c.b16 %v1167, %v1164
        %v1312 = vpack.c.b16 %v1168, %v1165
        %v1313 = vpack.c.b16 %v1172, %v1169
        %v1314 = vpack.c.b16 %v1173, %v1170
        %v1315 = vpack.c.b16 %v1174, %v1171
        %v1316 = vpack.c.b16 %v1178, %v1175
        %v1317 = vpack.c.b16 %v1179, %v1176
        %v1318 = vpack.c.b16 %v1180, %v1177
        %v1319 = vpack.c.b16 %v1184, %v1181
        %v1320 = vpack.c.b16 %v1185, %v1182
        %v1321 = vpack.c.b16 %v1186, %v1183
        %v1322 = vpack.c.b16 %v1190, %v1187
        %v1323 = vpack.c.b16 %v1191, %v1188
        %v1324 = vpack.c.b16 %v1192, %v1189
        %v1325 = vpack.c.b16 %v1196, %v1193
        %v1326 = vpack.c.b16 %v1197, %v1194
        %v1327 = vpack.c.b16 %v1198, %v1195
        %v1328 = vpack.c.b16 %v1202, %v1199
        %v1329 = vpack.c.b16 %v1203, %v1200
        %v1330 = vpack.c.b16 %v1204, %v1201
        %v1331 = vpack.c.b16 %v1208, %v1205
        %v1332 = vpack.c.b16 %v1209, %v1206
        %v1333 = vpack.c.b16 %v1210, %v1207
        %v1334 = vpack.c.b16 %v1214, %v1211
        %v1335 = vpack.c.b16 %v1215, %v1212
        %v1336 = vpack.c.b16 %v1216, %v1213
        %v1337 = vpack.c.b16 %v1220, %v1217
        %v1338 = vpack.c.b16 %v1221, %v1218
        %v1339 = vpack.c.b16 %v1222, %v1219
        %v1340 = vpack.c.b16 %v1226, %v1223
        %v1341 = vpack.c.b16 %v1227, %v1224
        %v1342 = vpack.c.b16 %v1228, %v1225
        %v1343 = vpack.c.b16 %v1232, %v1229
        %v1344 = vpack.c.b16 %v1233, %v1230
        %v1345 = vpack.c.b16 %v1234, %v1231
        %v1346 = vpack.c.b16 %v1238, %v1235
        %v1347 = vpack.c.b16 %v1239, %v1236
        %v1348 = vpack.c.b16 %v1240, %v1237
        %v1349 = vpack.c.b16 %v1244, %v1241
        %v1350 = vpack.c.b16 %v1245, %v1242
        %v1351 = vpack.c.b16 %v1246, %v1243
        %v1352 = vpack.c.b16 %v1250, %v1247
        %v1353 = vpack.c.b16 %v1251, %v1248
        %v1354 = vpack.c.b16 %v1252, %v1249
        %v1355 = vpack.c.b16 %v1256, %v1253
        %v1356 = vpack.c.b16 %v1257, %v1254
        %v1357 = vpack.c.b16 %v1258, %v1255
        %v1358 = vpack.c.b16 %v1262, %v1259
        %v1359 = vpack.c.b16 %v1263, %v1260
        %v1360 = vpack.c.b16 %v1264, %v1261
        %1457 = vmatprep.subr.bf16.mxu0 %v1287
        %1458 = vmatpush1.bf16.msra.mxu0 %v1286
        %1459 = vmatprep.subr.bf16.mxu0 %v1284
        %1460 = vmatpush1.bf16.msra.mxu0 %v1283
        %1461 = vmatprep.subr.bf16.mxu0 %v1281
        %1462 = vmatpush1.bf16.msra.mxu0 %v1280
        %1463 = vmatprep.subr.bf16.mxu0 %v1278
        %1464 = vmatpush1.bf16.msra.mxu0 %v1277
        %1465 = vmatprep.subr.bf16.mxu0 %v1275
        %1466 = vmatpush1.bf16.msra.mxu0 %v1274
        %1467 = vmatprep.subr.bf16.mxu0 %v1272
        %1468 = vmatpush1.bf16.msra.mxu0 %v1271
        %1469 = vmatprep.subr.bf16.mxu0 %v1269
        %1470 = vmatpush1.bf16.msra.mxu0 %v1268
        %1471 = vmatprep.subr.bf16.mxu0 %v1266
        %1472 = vmatpush1.bf16.msra.mxu0 %v1265
        %1473 = vmatprep.subr.bf16.mxu0 %v1311
        %1474 = vmatpush2.bf16.msra.mxu0 %v1310
        %1475 = vmatprep.subr.bf16.mxu0 %v1308
        %1476 = vmatpush2.bf16.msra.mxu0 %v1307
        %1477 = vmatprep.subr.bf16.mxu0 %v1305
        %1478 = vmatpush2.bf16.msra.mxu0 %v1304
        %1479 = vmatprep.subr.bf16.mxu0 %v1302
        %1480 = vmatpush2.bf16.msra.mxu0 %v1301
        %1481 = vmatprep.subr.bf16.mxu0 %v1299
        %1482 = vmatpush2.bf16.msra.mxu0 %v1298
        %1483 = vmatprep.subr.bf16.mxu0 %v1296
        %1484 = vmatpush2.bf16.msra.mxu0 %v1295
        %1485 = vmatprep.subr.bf16.mxu0 %v1293
        %1486 = vmatpush2.bf16.msra.mxu0 %v1292
        %1487 = vmatprep.subr.bf16.mxu0 %v1290
        %1488 = vmatpush2.bf16.msra.mxu0 %v1289
        %1489 = vmatprep.mubr.bf16.mxu0 %v797
        %1490 = vmatmul.mubr.bf16.gmra.mxu0 %v796
        %v1491 = vpop.f32.mrf.mxu0
        %v1492 = vadd.f32 %v933, %v1491
        %v1493 = vpop.f32.mrf.mxu0
        %v1494 = vadd.f32 %v937, %v1493
        %v1495 = vpop.f32.mrf.mxu0
        %v1496 = vadd.f32 %v933, %v1495
        %v1497 = vpop.f32.mrf.mxu0
        %v1498 = vadd.f32 %v937, %v1497
        %1499 = vdwg.mxu0
        %1500 = vmatprep.subr.bf16.mxu0 %v1335
        %1501 = vmatpush1.bf16.msra.mxu0 %v1334
        %1502 = vmatprep.subr.bf16.mxu0 %v1332
        %1503 = vmatpush1.bf16.msra.mxu0 %v1331
        %1504 = vmatprep.subr.bf16.mxu0 %v1329
        %1505 = vmatpush1.bf16.msra.mxu0 %v1328
        %1506 = vmatprep.subr.bf16.mxu0 %v1326
        %1507 = vmatpush1.bf16.msra.mxu0 %v1325
        %1508 = vmatprep.subr.bf16.mxu0 %v1323
        %1509 = vmatpush1.bf16.msra.mxu0 %v1322
        %1510 = vmatprep.subr.bf16.mxu0 %v1320
        %1511 = vmatpush1.bf16.msra.mxu0 %v1319
        %1512 = vmatprep.subr.bf16.mxu0 %v1317
        %1513 = vmatpush1.bf16.msra.mxu0 %v1316
        %1514 = vmatprep.subr.bf16.mxu0 %v1314
        %1515 = vmatpush1.bf16.msra.mxu0 %v1313
        %1516 = vmatprep.subr.bf16.mxu0 %v1359
        %1517 = vmatpush2.bf16.msra.mxu0 %v1358
        %1518 = vmatprep.subr.bf16.mxu0 %v1356
        %1519 = vmatpush2.bf16.msra.mxu0 %v1355
        %1520 = vmatprep.subr.bf16.mxu0 %v1353
        %1521 = vmatpush2.bf16.msra.mxu0 %v1352
        %1522 = vmatprep.subr.bf16.mxu0 %v1350
        %1523 = vmatpush2.bf16.msra.mxu0 %v1349
        %1524 = vmatprep.subr.bf16.mxu0 %v1347
        %1525 = vmatpush2.bf16.msra.mxu0 %v1346
        %1526 = vmatprep.subr.bf16.mxu0 %v1344
        %1527 = vmatpush2.bf16.msra.mxu0 %v1343
        %1528 = vmatprep.subr.bf16.mxu0 %v1341
        %1529 = vmatpush2.bf16.msra.mxu0 %v1340
        %1530 = vmatprep.subr.bf16.mxu0 %v1338
        %1531 = vmatpush2.bf16.msra.mxu0 %v1337
        %1532 = vmatprep.mubr.bf16.mxu0 %v799
        %1533 = vmatmul.mubr.bf16.gmra.mxu0 %v798
        %v1534 = vpop.f32.mrf.mxu0
        %v1535 = vadd.f32 %v1492, %v1534
        %v1536 = vpop.f32.mrf.mxu0
        %v1537 = vadd.f32 %v1494, %v1536
        %v1538 = vpop.f32.mrf.mxu0
        %v1539 = vadd.f32 %v1496, %v1538
        %v1540 = vpop.f32.mrf.mxu0
        %v1541 = vadd.f32 %v1498, %v1540
        %1542 = vdwg.mxu0
        %1543 = vmatprep.subr.bf16.mxu0 0
        %1544 = vmatpush1.bf16.msra.mxu0 %v1288
        %1545 = vmatprep.subr.bf16.mxu0 0
        %1546 = vmatpush1.bf16.msra.mxu0 %v1285
        %1547 = vmatprep.subr.bf16.mxu0 0
        %1548 = vmatpush1.bf16.msra.mxu0 %v1282
        %1549 = vmatprep.subr.bf16.mxu0 0
        %1550 = vmatpush1.bf16.msra.mxu0 %v1279
        %1551 = vmatprep.subr.bf16.mxu0 0
        %1552 = vmatpush1.bf16.msra.mxu0 %v1276
        %1553 = vmatprep.subr.bf16.mxu0 0
        %1554 = vmatpush1.bf16.msra.mxu0 %v1273
        %1555 = vmatprep.subr.bf16.mxu0 0
        %1556 = vmatpush1.bf16.msra.mxu0 %v1270
        %1557 = vmatprep.subr.bf16.mxu0 0
        %1558 = vmatpush1.bf16.msra.mxu0 %v1267
        %1559 = vmatprep.subr.bf16.mxu0 0
        %1560 = vmatpush2.bf16.msra.mxu0 %v1312
        %1561 = vmatprep.subr.bf16.mxu0 0
        %1562 = vmatpush2.bf16.msra.mxu0 %v1309
        %1563 = vmatprep.subr.bf16.mxu0 0
        %1564 = vmatpush2.bf16.msra.mxu0 %v1306
        %1565 = vmatprep.subr.bf16.mxu0 0
        %1566 = vmatpush2.bf16.msra.mxu0 %v1303
        %1567 = vmatprep.subr.bf16.mxu0 0
        %1568 = vmatpush2.bf16.msra.mxu0 %v1300
        %1569 = vmatprep.subr.bf16.mxu0 0
        %1570 = vmatpush2.bf16.msra.mxu0 %v1297
        %1571 = vmatprep.subr.bf16.mxu0 0
        %1572 = vmatpush2.bf16.msra.mxu0 %v1294
        %1573 = vmatprep.subr.bf16.mxu0 0
        %1574 = vmatpush2.bf16.msra.mxu0 %v1291
        %1575 = vmatprep.mubr.bf16.mxu0 %v797
        %1576 = vmatmul.mubr.bf16.gmra.mxu0 %v796
        %v1577 = vpop.f32.mrf.mxu0
        %v1578 = vadd.f32 %v941, %v1577
        %v1579 = vpop.f32.mrf.mxu0
        %v1580 = vpop.f32.mrf.mxu0
        %v1581 = vadd.f32 %v941, %v1580
        %v1582 = vpop.f32.mrf.mxu0
        %1583 = vdwg.mxu0
        %1584 = vmatprep.subr.bf16.mxu0 0
        %1585 = vmatpush1.bf16.msra.mxu0 %v1336
        %1586 = vmatprep.subr.bf16.mxu0 0
        %1587 = vmatpush1.bf16.msra.mxu0 %v1333
        %1588 = vmatprep.subr.bf16.mxu0 0
        %1589 = vmatpush1.bf16.msra.mxu0 %v1330
        %1590 = vmatprep.subr.bf16.mxu0 0
        %1591 = vmatpush1.bf16.msra.mxu0 %v1327
        %1592 = vmatprep.subr.bf16.mxu0 0
        %1593 = vmatpush1.bf16.msra.mxu0 %v1324
        %1594 = vmatprep.subr.bf16.mxu0 0
        %1595 = vmatpush1.bf16.msra.mxu0 %v1321
        %1596 = vmatprep.subr.bf16.mxu0 0
        %1597 = vmatpush1.bf16.msra.mxu0 %v1318
        %1598 = vmatprep.subr.bf16.mxu0 0
        %1599 = vmatpush1.bf16.msra.mxu0 %v1315
        %1600 = vmatprep.subr.bf16.mxu0 0
        %1601 = vmatpush2.bf16.msra.mxu0 %v1360
        %1602 = vmatprep.subr.bf16.mxu0 0
        %1603 = vmatpush2.bf16.msra.mxu0 %v1357
        %1604 = vmatprep.subr.bf16.mxu0 0
        %1605 = vmatpush2.bf16.msra.mxu0 %v1354
        %1606 = vmatprep.subr.bf16.mxu0 0
        %1607 = vmatpush2.bf16.msra.mxu0 %v1351
        %1608 = vmatprep.subr.bf16.mxu0 0
        %1609 = vmatpush2.bf16.msra.mxu0 %v1348
        %1610 = vmatprep.subr.bf16.mxu0 0
        %1611 = vmatpush2.bf16.msra.mxu0 %v1345
        %1612 = vmatprep.subr.bf16.mxu0 0
        %1613 = vmatpush2.bf16.msra.mxu0 %v1342
        %1614 = vmatprep.subr.bf16.mxu0 0
        %1615 = vmatpush2.bf16.msra.mxu0 %v1339
        %1616 = vmatprep.mubr.bf16.mxu0 %v799
        %1617 = vmatmul.mubr.bf16.gmra.mxu0 %v798
        %v1618 = vpop.f32.mrf.mxu0
        %v1619 = vadd.f32 %v1578, %v1618
        %v1620 = vpop.f32.mrf.mxu0
        %v1621 = vpop.f32.mrf.mxu0
        %v1622 = vadd.f32 %v1581, %v1621
        %v1623 = vpop.f32.mrf.mxu0
        %1624 = vdwg.mxu0
        %v1625 = vmax.f32 %v1535, 0.0
        %v1626 = vmax.f32 %v1537, 0.0
        %v1627 = vmax.f32 %v1619, 0.0
        %v1628 = vmax.f32 %v1539, 0.0
        %v1629 = vmax.f32 %v1541, 0.0
        %v1630 = vmax.f32 %v1622, 0.0
        %v1631 = vpack.c.bf16 %v1628, %v1625
        %v1632 = vpack.c.bf16 %v1629, %v1626
        %v1633 = vpack.c.bf16 %v1630, %v1627
        %v1634 = vld [vmem:[%s417] sm:$0xf]
        %v1635 = vld [vmem:[%s417 + $0x4] sm:$0xf]
        %v1636 = vld [vmem:[%s417 + $0x8] sm:$0xf]
        %v1637 = vld [vmem:[%s417 + $0xc] sm:$0xf]
        %v1638 = vld [vmem:[%s417 + $0x10] sm:$0xf]
        %v1639 = vld [vmem:[%s417 + $0x14] sm:$0xf]
        %v1640 = vld [vmem:[%s417 + $0x18] sm:$0xf]
        %v1641 = vld [vmem:[%s417 + $0x1c] sm:$0xf]
        %v1642 = vld [vmem:[%s417 + $0x20] sm:$0xf]
        %v1643 = vld [vmem:[%s417 + $0x24] sm:$0xf]
        %v1644 = vld [vmem:[%s417 + $0x28] sm:$0xf]
        %v1645 = vld [vmem:[%s417 + $0x2c] sm:$0xf]
        %v1646 = vld [vmem:[%s417 + $0x30] sm:$0xf]
        %v1647 = vld [vmem:[%s417 + $0x34] sm:$0xf]
        %v1648 = vld [vmem:[%s417 + $0x38] sm:$0xf]
        %v1649 = vld [vmem:[%s417 + $0x3c] sm:$0xf]
        %v1650 = vld [vmem:[%s417 + $0x40] sm:$0xf]
        %v1651 = vld [vmem:[%s417 + $0x44] sm:$0xf]
        %v1652 = vld [vmem:[%s417 + $0x48] sm:$0xf]
        %v1653 = vld [vmem:[%s417 + $0x4c] sm:$0xf]
        %v1654 = vld [vmem:[%s417 + $0x50] sm:$0xf]
        %v1655 = vld [vmem:[%s417 + $0x54] sm:$0xf]
        %v1656 = vld [vmem:[%s417 + $0x58] sm:$0xf]
        %v1657 = vld [vmem:[%s417 + $0x5c] sm:$0xf]
        %v1658 = vld [vmem:[%s417 + $0x60] sm:$0xf]
        %v1659 = vld [vmem:[%s417 + $0x64] sm:$0xf]
        %v1660 = vld [vmem:[%s417 + $0x68] sm:$0xf]
        %v1661 = vld [vmem:[%s417 + $0x6c] sm:$0xf]
        %v1662 = vld [vmem:[%s417 + $0x70] sm:$0xf]
        %v1663 = vld [vmem:[%s417 + $0x74] sm:$0xf]
        %v1664 = vld [vmem:[%s417 + $0x78] sm:$0xf]
        %v1665 = vld [vmem:[%s417 + $0x7c] sm:$0xf]
        %v1666 = vld [vmem:[%s417 + $0x80] sm:$0xf]
        %v1667 = vld [vmem:[%s417 + $0x84] sm:$0xf]
        %v1668 = vld [vmem:[%s417 + $0x88] sm:$0xf]
        %v1669 = vld [vmem:[%s417 + $0x8c] sm:$0xf]
        %v1670 = vld [vmem:[%s417 + $0x90] sm:$0xf]
        %v1671 = vld [vmem:[%s417 + $0x94] sm:$0xf]
        %v1672 = vld [vmem:[%s417 + $0x98] sm:$0xf]
        %v1673 = vld [vmem:[%s417 + $0x9c] sm:$0xf]
        %v1674 = vld [vmem:[%s417 + $0xa0] sm:$0xf]
        %v1675 = vld [vmem:[%s417 + $0xa4] sm:$0xf]
        %v1676 = vld [vmem:[%s417 + $0xa8] sm:$0xf]
        %v1677 = vld [vmem:[%s417 + $0xac] sm:$0xf]
        %v1678 = vld [vmem:[%s417 + $0xb0] sm:$0xf]
        %v1679 = vld [vmem:[%s417 + $0xb4] sm:$0xf]
        %v1680 = vld [vmem:[%s417 + $0xb8] sm:$0xf]
        %v1681 = vld [vmem:[%s417 + $0xbc] sm:$0xf]
        %v1682 = vld [vmem:[%s477] sm:$0x1]
        %v1684 = vlaneseq
        %v1685 = vshrl.u32 %v1684, 7
        %v1686 = vsub.s32 0, %v1685
        %v1687 = vrot.slane %v1682, %v1686
        %v1737 = vunpack.c.l.b16 %v1634
        %v1738 = vunpack.c.l.b16 %v1635
        %v1739 = vunpack.c.l.b16 %v1636
        %v1740 = vunpack.c.l.b16 %v1637
        %v1741 = vunpack.c.l.b16 %v1638
        %v1742 = vunpack.c.l.b16 %v1639
        %v1743 = vunpack.c.l.b16 %v1640
        %v1744 = vunpack.c.l.b16 %v1641
        %v1745 = vunpack.c.l.b16 %v1642
        %v1746 = vunpack.c.l.b16 %v1643
        %v1747 = vunpack.c.l.b16 %v1644
        %v1748 = vunpack.c.l.b16 %v1645
        %v1749 = vunpack.c.l.b16 %v1646
        %v1750 = vunpack.c.l.b16 %v1647
        %v1751 = vunpack.c.l.b16 %v1648
        %v1752 = vunpack.c.l.b16 %v1649
        %v1753 = vunpack.c.l.b16 %v1650
        %v1754 = vunpack.c.l.b16 %v1651
        %v1755 = vunpack.c.l.b16 %v1652
        %v1756 = vunpack.c.l.b16 %v1653
        %v1757 = vunpack.c.l.b16 %v1654
        %v1758 = vunpack.c.l.b16 %v1655
        %v1759 = vunpack.c.l.b16 %v1656
        %v1760 = vunpack.c.l.b16 %v1657
        %v1761 = vunpack.c.l.b16 %v1658
        %v1762 = vunpack.c.l.b16 %v1659
        %v1763 = vunpack.c.l.b16 %v1660
        %v1764 = vunpack.c.l.b16 %v1661
        %v1765 = vunpack.c.l.b16 %v1662
        %v1766 = vunpack.c.l.b16 %v1663
        %v1767 = vunpack.c.l.b16 %v1664
        %v1768 = vunpack.c.l.b16 %v1665
        %v1769 = vunpack.c.l.b16 %v1666
        %v1770 = vunpack.c.l.b16 %v1667
        %v1771 = vunpack.c.l.b16 %v1668
        %v1772 = vunpack.c.l.b16 %v1669
        %v1773 = vunpack.c.l.b16 %v1670
        %v1774 = vunpack.c.l.b16 %v1671
        %v1775 = vunpack.c.l.b16 %v1672
        %v1776 = vunpack.c.l.b16 %v1673
        %v1777 = vunpack.c.l.b16 %v1674
        %v1778 = vunpack.c.l.b16 %v1675
        %v1779 = vunpack.c.l.b16 %v1676
        %v1780 = vunpack.c.l.b16 %v1677
        %v1781 = vunpack.c.l.b16 %v1678
        %v1782 = vunpack.c.l.b16 %v1679
        %v1783 = vunpack.c.l.b16 %v1680
        %v1784 = vunpack.c.l.b16 %v1681
        %v1785 = vpack.c.b16 %v1738, %v1737
        %v1786 = vpack.c.b16 %v1740, %v1739
        %v1787 = vpack.c.b16 %v1742, %v1741
        %v1788 = vpack.c.b16 %v1744, %v1743
        %v1789 = vpack.c.b16 %v1746, %v1745
        %v1790 = vpack.c.b16 %v1748, %v1747
        %v1791 = vpack.c.b16 %v1750, %v1749
        %v1792 = vpack.c.b16 %v1752, %v1751
        %v1793 = vpack.c.b16 %v1754, %v1753
        %v1794 = vpack.c.b16 %v1756, %v1755
        %v1795 = vpack.c.b16 %v1758, %v1757
        %v1796 = vpack.c.b16 %v1760, %v1759
        %v1797 = vpack.c.b16 %v1762, %v1761
        %v1798 = vpack.c.b16 %v1764, %v1763
        %v1799 = vpack.c.b16 %v1766, %v1765
        %v1800 = vpack.c.b16 %v1768, %v1767
        %v1801 = vpack.c.b16 %v1770, %v1769
        %v1802 = vpack.c.b16 %v1772, %v1771
        %v1803 = vpack.c.b16 %v1774, %v1773
        %v1804 = vpack.c.b16 %v1776, %v1775
        %v1805 = vpack.c.b16 %v1778, %v1777
        %v1806 = vpack.c.b16 %v1780, %v1779
        %v1807 = vpack.c.b16 %v1782, %v1781
        %v1808 = vpack.c.b16 %v1784, %v1783
        %1833 = vmatprep.subr.bf16.mxu0 0
        %1834 = vmatpush1.bf16.msra.mxu0 %v1792
        %1835 = vmatprep.subr.bf16.mxu0 0
        %1836 = vmatpush1.bf16.msra.mxu0 %v1791
        %1837 = vmatprep.subr.bf16.mxu0 0
        %1838 = vmatpush1.bf16.msra.mxu0 %v1790
        %1839 = vmatprep.subr.bf16.mxu0 0
        %1840 = vmatpush1.bf16.msra.mxu0 %v1789
        %1841 = vmatprep.subr.bf16.mxu0 0
        %1842 = vmatpush1.bf16.msra.mxu0 %v1788
        %1843 = vmatprep.subr.bf16.mxu0 0
        %1844 = vmatpush1.bf16.msra.mxu0 %v1787
        %1845 = vmatprep.subr.bf16.mxu0 0
        %1846 = vmatpush1.bf16.msra.mxu0 %v1786
        %1847 = vmatprep.subr.bf16.mxu0 0
        %1848 = vmatpush1.bf16.msra.mxu0 %v1785
        %1849 = vmatprep.subr.bf16.mxu0 0
        %1850 = vmatpush2.bf16.msra.mxu0 %v1800
        %1851 = vmatprep.subr.bf16.mxu0 0
        %1852 = vmatpush2.bf16.msra.mxu0 %v1799
        %1853 = vmatprep.subr.bf16.mxu0 0
        %1854 = vmatpush2.bf16.msra.mxu0 %v1798
        %1855 = vmatprep.subr.bf16.mxu0 0
        %1856 = vmatpush2.bf16.msra.mxu0 %v1797
        %1857 = vmatprep.subr.bf16.mxu0 0
        %1858 = vmatpush2.bf16.msra.mxu0 %v1796
        %1859 = vmatprep.subr.bf16.mxu0 0
        %1860 = vmatpush2.bf16.msra.mxu0 %v1795
        %1861 = vmatprep.subr.bf16.mxu0 0
        %1862 = vmatpush2.bf16.msra.mxu0 %v1794
        %1863 = vmatprep.subr.bf16.mxu0 0
        %1864 = vmatpush2.bf16.msra.mxu0 %v1793
        %1865 = vmatprep.mubr.bf16.mxu0 %v1632
        %1866 = vmatmul.mubr.bf16.gmra.mxu0 %v1631
        %v1867 = vpop.f32.mrf.mxu0
        %v1868 = vadd.f32 %v1687, %v1867
        %v1869 = vpop.f32.mrf.mxu0
        %v1870 = vpop.f32.mrf.mxu0
        %v1871 = vadd.f32 %v1687, %v1870
        %v1872 = vpop.f32.mrf.mxu0
        %1873 = vdwg.mxu0
        %1874 = vmatprep.subr.bf16.mxu0 0
        %1875 = vmatpush1.bf16.msra.mxu0 %v1808
        %1876 = vmatprep.subr.bf16.mxu0 0
        %1877 = vmatpush1.bf16.msra.mxu0 %v1807
        %1878 = vmatprep.subr.bf16.mxu0 0
        %1879 = vmatpush1.bf16.msra.mxu0 %v1806
        %1880 = vmatprep.subr.bf16.mxu0 0
        %1881 = vmatpush1.bf16.msra.mxu0 %v1805
        %1882 = vmatprep.subr.bf16.mxu0 0
        %1883 = vmatpush1.bf16.msra.mxu0 %v1804
        %1884 = vmatprep.subr.bf16.mxu0 0
        %1885 = vmatpush1.bf16.msra.mxu0 %v1803
        %1886 = vmatprep.subr.bf16.mxu0 0
        %1887 = vmatpush1.bf16.msra.mxu0 %v1802
        %1888 = vmatprep.subr.bf16.mxu0 0
        %1889 = vmatpush1.bf16.msra.mxu0 %v1801
        %1890 = vmatprep.subr.bf16.mxu0 0
        %1891 = vmatpush2.bf16.msra.mxu0 0
        %1892 = vmatprep.subr.bf16.mxu0 0
        %1893 = vmatpush2.bf16.msra.mxu0 0
        %1894 = vmatprep.subr.bf16.mxu0 0
        %1895 = vmatpush2.bf16.msra.mxu0 0
        %1896 = vmatprep.subr.bf16.mxu0 0
        %1897 = vmatpush2.bf16.msra.mxu0 0
        %1898 = vmatprep.subr.bf16.mxu0 0
        %1899 = vmatpush2.bf16.msra.mxu0 0
        %1900 = vmatprep.subr.bf16.mxu0 0
        %1901 = vmatpush2.bf16.msra.mxu0 0
        %1902 = vmatprep.subr.bf16.mxu0 0
        %1903 = vmatpush2.bf16.msra.mxu0 0
        %1904 = vmatprep.subr.bf16.mxu0 0
        %1905 = vmatpush2.bf16.msra.mxu0 0
        %1906 = vmatprep.mubr.bf16.mxu0 0
        %1907 = vmatmul.mubr.bf16.gmra.mxu0 %v1633
        %v1908 = vpop.f32.mrf.mxu0
        %v1909 = vadd.f32 %v1868, %v1908
        %v1910 = vpop.f32.mrf.mxu0
        %v1911 = vpop.f32.mrf.mxu0
        %v1912 = vadd.f32 %v1871, %v1911
        %v1913 = vpop.f32.mrf.mxu0
        %1914 = vdwg.mxu0
        %1915 = vst [vmem:[%s469] sm:$0xff] %v1909
        %1916 = vst [vmem:[%s469 + $0x8] sm:$0xff] %v1912
        %s1917 = sand.u32 %s232, 1
        %s1918 = scalar_lea.sflag [#allocation4], %s1917
        %s1919 = sand.u32 %s232, 1
        %s1920 = smul.addr %s1919, 16
        %s1921 = scalar_lea.vmem [#allocation11], %s1920
        // Predicated region
        $region69: #{tpu_custom_call.1} parent=47 // pred_check
          %p1922 = pneg %p242
        $region70: #{tpu_custom_call.1} parent=47 // pred_check_branch
          %1924 = sbr.rel (%p1922) target = $region72
        $region71: #{tpu_custom_call.1} parent=47 // pred_region
          %s1925 = smul.u32 2, %s33
          %s1927 = ssub.s32 256, 256
          %1928 = vsyncadd %s1918, %s1927
          %s1929 = smul.addr %s32, 2
          %s1930 = sadd.s32 %s1925, %s1929
          %s1931 = smul.addr %s1930, 128
          %s1932 = scalar_lea.hbm %s7, %s1931
          %s1933 = sshll.u32 %s1921, 4
          %s1934 = int_to_ptr.vmem [resolvable:$true] %s1933
          %1939 = dma.vmem_to_hbm [thread:$0]  %s1934, 256, %s1932, %s1918, 128, 128, 8
        $region72: #{tpu_custom_call.1} parent=47 // pred_fallthru
          _
      $region48: #{tpu_custom_call.1} parent=5 // pred_fallthru
        _
      %p1940 = scmp.le.s32.totalorder 2, %s23
      // Predicated region
      $region73: #{tpu_custom_call.1} parent=5 // pred_check
        %p1941 = pneg %p1940
      $region74: #{tpu_custom_call.1} parent=5 // pred_check_branch
        %1943 = sbr.rel (%p1941) target = $region76
      $region75: #{tpu_custom_call.1} parent=5 // pred_region
        %s1944 = ssub.s32 %s23, 2
        // Predicated region
        $region77: #{tpu_custom_call.1} parent=75 // pred_check
          %p1945 = pneg %p248
        $region78: #{tpu_custom_call.1} parent=75 // pred_check_branch
          %1947 = sbr.rel (%p1945) target = $region80
        $region79: #{tpu_custom_call.1} parent=75 // pred_region
          %s1948 = sand.u32 %s233, 1
          %s1949 = scalar_lea.sflag [#allocation4], %s1948
          %s1950 = sand.u32 %s233, 1
          %s1951 = smul.addr %s1950, 16
          %s1952 = scalar_lea.vmem [#allocation11], %s1951
          %1953 = dma.done %s1949, 256
        $region80: #{tpu_custom_call.1} parent=75 // pred_fallthru
          _
      $region76: #{tpu_custom_call.1} parent=5 // pred_fallthru
        _
    $region6: #{tpu_custom_call.1} parent=1 // loop_footer
      %s27 = sadd.s32 1, %s23
    $region7: #{tpu_custom_call.1} parent=1 // loop_footer_branch
      %22 = sbr.rel target = $region3
    $region8: #{tpu_custom_call.1} parent=1 // loop_exit
      _
    %1954 = vsyncpa [#allocation3], 1
    %s1955 = scalar_lea.sflag [#allocation3], 1
    %1956 = vsyncpa %s1955, 1
    %1957 = vsyncpa [#allocation6], 1
    %s1958 = scalar_lea.sflag [#allocation6], 1
    %1959 = vsyncpa %s1958, 1
    %1960 = vsyncpa [#allocation9], 1
    %s1961 = scalar_lea.sflag [#allocation9], 1
    %1962 = vsyncpa %s1961, 1
    %1963 = vsyncpa [#allocation4], 1
    %s1964 = scalar_lea.sflag [#allocation4], 1
    %1965 = vsyncpa %s1964, 1

</llo_original>
